<compile_context>
chip_gen: v5e
topology: v5e:2x2
jax: 0.10.0
libtpu: 0.0.40
codegen_flags: <defaults>
</compile_context>

<pallas_src>
import jax
import jax.numpy as jnp
from jax import lax
from jax.experimental import pallas as pl
from jax.experimental.pallas import tpu as pltpu


def ae_kernel(x_ref,
              w1t, b1t, w2t, b2t, w34t, b34t, w5t, b5t, w6, b6,
              o_ref):
    """Forward pass on one batch tile.

    x_ref: (tn, dim) batch-major input block.
    Middle activations live in (features, tn) layout (batch on the lane axis),
    so every tanh / bias-add / matmul N-dim is fully lane-dense.
    o_ref: (tn, dim) batch-major output block.
    """
    f32 = jnp.float32
    x = x_ref[...]                                       # (tn, dim)

    # Encoder L1: contract the feature dim of (dout1, din) with (tn, din)
    # -> (dout1, tn).  NT dot_general == w1t @ x.T with no explicit transpose.
    h = lax.dot_general(w1t[...], x, (((1,), (1,)), ((), ())),
                        preferred_element_type=f32) + b1t[...]
    h = jnp.tanh(h)

    # Encoder L2, fused (encoder L3 + decoder L1), decoder L2 — all in the
    # lane-dense (dout, tn) layout.
    h = jnp.tanh(jnp.dot(w2t[...], h, preferred_element_type=f32) + b2t[...])
    h = jnp.tanh(jnp.dot(w34t[...], h, preferred_element_type=f32) + b34t[...])
    h = jnp.tanh(jnp.dot(w5t[...], h, preferred_element_type=f32) + b5t[...])

    # Decoder L3 (no tanh): contract dim 0 of (d5, tn) with dim 0 of (d5, dout)
    # -> (tn, dout), i.e. the batch-major output block directly.
    o = lax.dot_general(h, w6[...], (((0,), (0,)), ((), ())),
                        preferred_element_type=f32) + b6[...]
    o_ref[...] = o.astype(o_ref.dtype)


def _auto_tile(batch, *, max_tn=2048, min_steps=4):
    """Largest multiple-of-128 batch tile <= max_tn that keeps >= min_steps grid steps."""
    per_step = max(batch // min_steps, 1)
    tn = (per_step // 128) * 128
    return int(max(128, min(max_tn, tn)))


def nonlinear_ae_forward(x, params, *, tn=None, max_tn=2048):
    """x: (B, dim) float32.  params: 6 (W, b) pairs, W (din, dout), b (1, dout).

    Returns (B, dim) float32, matching PyTorch decoder(encoder(x)).
    """
    B, dim = x.shape
    out_dim = params[-1][0].shape[1]

    if tn is None:
        tn = _auto_tile(B, max_tn=max_tn)
    steps = pl.cdiv(B, tn)
    b_pad = steps * tn

    (w1, b1), (w2, b2), (w3, b3), (w4, b4), (w5, b5), (w6, b6) = params

    # Exact algebraic fusion of the two back-to-back linears (no nonlinearity
    # between encoder L3 and decoder L1).
    w34 = w3 @ w4
    b34 = b3 @ w4 + b4

    # Transposed (dout, din) weights / (dout, 1) biases for the features-major
    # middle layers; the last layer stays (din, dout) / (1, dout) so the TN
    # dot_general emits the batch-major output block directly.
    ops = [w1.T, b1.T, w2.T, b2.T, w34.T, b34.T, w5.T, b5.T, w6, b6]

    x_in = x if b_pad == B else jnp.pad(x, ((0, b_pad - B), (0, 0)))

    in_specs = [pl.BlockSpec((tn, dim), lambda i: (i, 0))]
    # Grid-invariant residents: constant block index, fetched once and reused.
    in_specs += [pl.BlockSpec(a.shape, lambda i: (0, 0)) for a in ops]

    out = pl.pallas_call(
        ae_kernel,
        out_shape=jax.ShapeDtypeStruct((b_pad, out_dim), x.dtype),
        grid=(steps,),
        in_specs=in_specs,
        out_specs=pl.BlockSpec((tn, out_dim), lambda i: (i, 0)),
        compiler_params=pltpu.CompilerParams(
            dimension_semantics=("parallel",)),   # lets v7x shard batch over 2 TCs
    )(x_in, *ops)

    return out if b_pad == B else out[:B]


def init_params(key, dim, latent_dim):
    """Deterministic synthetic init mirroring nn.Linear's U(-1/sqrt(fan_in), ...)."""
    sf = 2
    layer_dims = [
        (dim, latent_dim * sf),              # encoder L1
        (latent_dim * sf, latent_dim * sf),  # encoder L2
        (latent_dim * sf, latent_dim),       # encoder L3
        (latent_dim, latent_dim * sf),       # decoder L1
        (latent_dim * sf, latent_dim * sf),  # decoder L2
        (latent_dim * sf, dim),              # decoder L3
    ]
    params = []
    for din, dout in layer_dims:
        key, kw, kb = jax.random.split(key, 3)
        bound = 1.0 / float(din) ** 0.5
        w = jax.random.uniform(kw, (din, dout), jnp.float32, -bound, bound)
        b = jax.random.uniform(kb, (1, dout), jnp.float32, -bound, bound)
        params.append((w, b))
    return params


def ref_forward(x, params):
    """Pure-JAX reference (tanh after layers 0, 1, 3, 4; none after 2, 5)."""
    h = x
    for idx, (w, b) in enumerate(params):
        h = h @ w + b
        if idx not in (2, 5):
            h = jnp.tanh(h)
    return h


if __name__ == "__main__":
    dim, latent_dim = 16, 4

    key = jax.random.PRNGKey(0)
    key, kx1, kx2 = jax.random.split(key, 3)
    params = init_params(key, dim, latent_dim)

    # Main config: B=2048 -> auto tile tn=512, grid of 4 "parallel" steps
    # (>= 2 pipelined steps per TensorCore on v7x).
    x = jax.random.normal(kx1, (2048, dim), jnp.float32)
    out = jax.block_until_ready(nonlinear_ae_forward(x, params))
    ref = ref_forward(x, params)
    assert out.shape == x.shape
    assert jnp.allclose(out, ref, atol=1e-4, rtol=1e-4), "mismatch vs reference (B=2048)"

    # Ragged batch: exercises the cdiv grid + pad-and-slice path.
    x2 = jax.random.normal(kx2, (300, dim), jnp.float32)
    out2 = jax.block_until_ready(nonlinear_ae_forward(x2, params))
    ref2 = ref_forward(x2, params)
    assert out2.shape == x2.shape
    assert jnp.allclose(out2, ref2, atol=1e-4, rtol=1e-4), "mismatch vs reference (B=300)"

    print("KERNEL_OK")
</pallas_src>

<mosaic_0001>
module attributes {stable_mosaic.version = 11 : i64} {
  func.func @ae_kernel(%arg0: i32, %arg1: memref<512x16xf32, #tpu.memory_space<vmem>>, %arg2: memref<8x16xf32, #tpu.memory_space<vmem>>, %arg3: memref<8x1xf32, #tpu.memory_space<vmem>>, %arg4: memref<8x8xf32, #tpu.memory_space<vmem>>, %arg5: memref<8x1xf32, #tpu.memory_space<vmem>>, %arg6: memref<8x8xf32, #tpu.memory_space<vmem>>, %arg7: memref<8x1xf32, #tpu.memory_space<vmem>>, %arg8: memref<8x8xf32, #tpu.memory_space<vmem>>, %arg9: memref<8x1xf32, #tpu.memory_space<vmem>>, %arg10: memref<8x16xf32, #tpu.memory_space<vmem>>, %arg11: memref<1x16xf32, #tpu.memory_space<vmem>>, %arg12: memref<512x16xf32, #tpu.memory_space<vmem>>) attributes {dimension_semantics = [#tpu.dimension_semantics<parallel>], iteration_bounds = array<i64: 4>, scalar_prefetch = 0 : i64, scratch_operands = 0 : i64, tpu.core_type = #tpu.core_type<tc>, window_params = [{transform_indices = @transform_0, window_bounds = array<i64: 512, 16>}, {pipeline_mode = #tpu.pipeline_mode<synchronous>, transform_indices = @transform_1, window_bounds = array<i64: 8, 16>}, {pipeline_mode = #tpu.pipeline_mode<synchronous>, transform_indices = @transform_2, window_bounds = array<i64: 8, 1>}, {pipeline_mode = #tpu.pipeline_mode<synchronous>, transform_indices = @transform_3, window_bounds = array<i64: 8, 8>}, {pipeline_mode = #tpu.pipeline_mode<synchronous>, transform_indices = @transform_4, window_bounds = array<i64: 8, 1>}, {pipeline_mode = #tpu.pipeline_mode<synchronous>, transform_indices = @transform_5, window_bounds = array<i64: 8, 8>}, {pipeline_mode = #tpu.pipeline_mode<synchronous>, transform_indices = @transform_6, window_bounds = array<i64: 8, 1>}, {pipeline_mode = #tpu.pipeline_mode<synchronous>, transform_indices = @transform_7, window_bounds = array<i64: 8, 8>}, {pipeline_mode = #tpu.pipeline_mode<synchronous>, transform_indices = @transform_8, window_bounds = array<i64: 8, 1>}, {pipeline_mode = #tpu.pipeline_mode<synchronous>, transform_indices = @transform_9, window_bounds = array<i64: 8, 16>}, {pipeline_mode = #tpu.pipeline_mode<synchronous>, transform_indices = @transform_10, window_bounds = array<i64: 1, 16>}, {transform_indices = @transform_11, window_bounds = array<i64: 512, 16>}]} {
    %c0 = arith.constant 0 : index
    %c0_0 = arith.constant 0 : index
    %0 = vector.load %arg1[%c0, %c0_0] : memref<512x16xf32, #tpu.memory_space<vmem>>, vector<512x16xf32>
    %c0_1 = arith.constant 0 : index
    %c0_2 = arith.constant 0 : index
    %1 = vector.load %arg2[%c0_1, %c0_2] : memref<8x16xf32, #tpu.memory_space<vmem>>, vector<8x16xf32>
    %cst = arith.constant dense<0.000000e+00> : vector<8x512xf32>
    %2 = tpu.matmul %1, %0, %cst {dimension_numbers = #tpu.dot_dimension_numbers<[1], [1], [0], [0], [0, 0, 1, 0], [], []>} : vector<8x16xf32>, vector<512x16xf32>, vector<8x512xf32> -> vector<8x512xf32>
    %c0_3 = arith.constant 0 : index
    %c0_4 = arith.constant 0 : index
    %3 = vector.load %arg3[%c0_3, %c0_4] : memref<8x1xf32, #tpu.memory_space<vmem>>, vector<8x1xf32>
    %4 = vector.broadcast %3 : vector<8x1xf32> to vector<8x512xf32>
    %5 = arith.addf %2, %4 : vector<8x512xf32>
    %6 = math.tanh %5 : vector<8x512xf32>
    %c0_5 = arith.constant 0 : index
    %c0_6 = arith.constant 0 : index
    %7 = vector.load %arg4[%c0_5, %c0_6] : memref<8x8xf32, #tpu.memory_space<vmem>>, vector<8x8xf32>
    %cst_7 = arith.constant dense<0.000000e+00> : vector<8x512xf32>
    %8 = tpu.matmul %7, %6, %cst_7 {dimension_numbers = #tpu.dot_dimension_numbers<[1], [0], [0], [1], [0, 0, 1, 1], [], []>} : vector<8x8xf32>, vector<8x512xf32>, vector<8x512xf32> -> vector<8x512xf32>
    %c0_8 = arith.constant 0 : index
    %c0_9 = arith.constant 0 : index
    %9 = vector.load %arg5[%c0_8, %c0_9] : memref<8x1xf32, #tpu.memory_space<vmem>>, vector<8x1xf32>
    %10 = vector.broadcast %9 : vector<8x1xf32> to vector<8x512xf32>
    %11 = arith.addf %8, %10 : vector<8x512xf32>
    %12 = math.tanh %11 : vector<8x512xf32>
    %c0_10 = arith.constant 0 : index
    %c0_11 = arith.constant 0 : index
    %13 = vector.load %arg6[%c0_10, %c0_11] : memref<8x8xf32, #tpu.memory_space<vmem>>, vector<8x8xf32>
    %cst_12 = arith.constant dense<0.000000e+00> : vector<8x512xf32>
    %14 = tpu.matmul %13, %12, %cst_12 {dimension_numbers = #tpu.dot_dimension_numbers<[1], [0], [0], [1], [0, 0, 1, 1], [], []>} : vector<8x8xf32>, vector<8x512xf32>, vector<8x512xf32> -> vector<8x512xf32>
    %c0_13 = arith.constant 0 : index
    %c0_14 = arith.constant 0 : index
    %15 = vector.load %arg7[%c0_13, %c0_14] : memref<8x1xf32, #tpu.memory_space<vmem>>, vector<8x1xf32>
    %16 = vector.broadcast %15 : vector<8x1xf32> to vector<8x512xf32>
    %17 = arith.addf %14, %16 : vector<8x512xf32>
    %18 = math.tanh %17 : vector<8x512xf32>
    %c0_15 = arith.constant 0 : index
    %c0_16 = arith.constant 0 : index
    %19 = vector.load %arg8[%c0_15, %c0_16] : memref<8x8xf32, #tpu.memory_space<vmem>>, vector<8x8xf32>
    %cst_17 = arith.constant dense<0.000000e+00> : vector<8x512xf32>
    %20 = tpu.matmul %19, %18, %cst_17 {dimension_numbers = #tpu.dot_dimension_numbers<[1], [0], [0], [1], [0, 0, 1, 1], [], []>} : vector<8x8xf32>, vector<8x512xf32>, vector<8x512xf32> -> vector<8x512xf32>
    %c0_18 = arith.constant 0 : index
    %c0_19 = arith.constant 0 : index
    %21 = vector.load %arg9[%c0_18, %c0_19] : memref<8x1xf32, #tpu.memory_space<vmem>>, vector<8x1xf32>
    %22 = vector.broadcast %21 : vector<8x1xf32> to vector<8x512xf32>
    %23 = arith.addf %20, %22 : vector<8x512xf32>
    %24 = math.tanh %23 : vector<8x512xf32>
    %c0_20 = arith.constant 0 : index
    %c0_21 = arith.constant 0 : index
    %25 = vector.load %arg10[%c0_20, %c0_21] : memref<8x16xf32, #tpu.memory_space<vmem>>, vector<8x16xf32>
    %cst_22 = arith.constant dense<0.000000e+00> : vector<512x16xf32>
    %26 = tpu.matmul %24, %25, %cst_22 {dimension_numbers = #tpu.dot_dimension_numbers<[0], [0], [1], [1], [0, 1, 1, 1], [], []>} : vector<8x512xf32>, vector<8x16xf32>, vector<512x16xf32> -> vector<512x16xf32>
    %c0_23 = arith.constant 0 : index
    %c0_24 = arith.constant 0 : index
    %27 = vector.load %arg11[%c0_23, %c0_24] : memref<1x16xf32, #tpu.memory_space<vmem>>, vector<1x16xf32>
    %28 = vector.broadcast %27 : vector<1x16xf32> to vector<512x16xf32>
    %29 = arith.addf %26, %28 : vector<512x16xf32>
    %c0_25 = arith.constant 0 : index
    %c0_26 = arith.constant 0 : index
    %30 = vector.load %arg12[%c0_25, %c0_26] : memref<512x16xf32, #tpu.memory_space<vmem>>, vector<512x16xf32>
    tpu.vector_store %arg12[%c0_25, %c0_26], %29 {strides = array<i32>} : memref<512x16xf32, #tpu.memory_space<vmem>>, vector<512x16xf32>,
    return
  }
  func.func @transform_0(%arg0: i32) -> (i32, i32) {
    %c0_i32 = arith.constant 0 : i32
    %c0_i32_0 = arith.constant 0 : i32
    return %arg0, %c0_i32 : i32, i32
  }
  func.func @transform_1(%arg0: i32) -> (i32, i32) {
    %c0_i32 = arith.constant 0 : i32
    %c0_i32_0 = arith.constant 0 : i32
    %c0_i32_1 = arith.constant 0 : i32
    return %c0_i32, %c0_i32_0 : i32, i32
  }
  func.func @transform_2(%arg0: i32) -> (i32, i32) {
    %c0_i32 = arith.constant 0 : i32
    %c0_i32_0 = arith.constant 0 : i32
    %c0_i32_1 = arith.constant 0 : i32
    return %c0_i32, %c0_i32_0 : i32, i32
  }
  func.func @transform_3(%arg0: i32) -> (i32, i32) {
    %c0_i32 = arith.constant 0 : i32
    %c0_i32_0 = arith.constant 0 : i32
    %c0_i32_1 = arith.constant 0 : i32
    return %c0_i32, %c0_i32_0 : i32, i32
  }
  func.func @transform_4(%arg0: i32) -> (i32, i32) {
    %c0_i32 = arith.constant 0 : i32
    %c0_i32_0 = arith.constant 0 : i32
    %c0_i32_1 = arith.constant 0 : i32
    return %c0_i32, %c0_i32_0 : i32, i32
  }
  func.func @transform_5(%arg0: i32) -> (i32, i32) {
    %c0_i32 = arith.constant 0 : i32
    %c0_i32_0 = arith.constant 0 : i32
    %c0_i32_1 = arith.constant 0 : i32
    return %c0_i32, %c0_i32_0 : i32, i32
  }
  func.func @transform_6(%arg0: i32) -> (i32, i32) {
    %c0_i32 = arith.constant 0 : i32
    %c0_i32_0 = arith.constant 0 : i32
    %c0_i32_1 = arith.constant 0 : i32
    return %c0_i32, %c0_i32_0 : i32, i32
  }
  func.func @transform_7(%arg0: i32) -> (i32, i32) {
    %c0_i32 = arith.constant 0 : i32
    %c0_i32_0 = arith.constant 0 : i32
    %c0_i32_1 = arith.constant 0 : i32
    return %c0_i32, %c0_i32_0 : i32, i32
  }
  func.func @transform_8(%arg0: i32) -> (i32, i32) {
    %c0_i32 = arith.constant 0 : i32
    %c0_i32_0 = arith.constant 0 : i32
    %c0_i32_1 = arith.constant 0 : i32
    return %c0_i32, %c0_i32_0 : i32, i32
  }
  func.func @transform_9(%arg0: i32) -> (i32, i32) {
    %c0_i32 = arith.constant 0 : i32
    %c0_i32_0 = arith.constant 0 : i32
    %c0_i32_1 = arith.constant 0 : i32
    return %c0_i32, %c0_i32_0 : i32, i32
  }
  func.func @transform_10(%arg0: i32) -> (i32, i32) {
    %c0_i32 = arith.constant 0 : i32
    %c0_i32_0 = arith.constant 0 : i32
    %c0_i32_1 = arith.constant 0 : i32
    return %c0_i32, %c0_i32_0 : i32, i32
  }
  func.func @transform_11(%arg0: i32) -> (i32, i32) {
    %c0_i32 = arith.constant 0 : i32
    %c0_i32_0 = arith.constant 0 : i32
    return %arg0, %c0_i32 : i32, i32
  }
}

</mosaic_0001>

<llo_original>
// kernel: tpu_custom_call.1
$region0: #{tpu_custom_call.1}
  #allocation0 [shape = 'u32[]', space=smem, size = 0x4, offset = 0x4, fixed_abs, tag = 'smem constant byte address 0x4 - core index']
  #allocation1 [shape = 'u32[72,128]{1,0:T(1,128)}', space=vmem, size = 0x9000, scoped, tag = 'internal scratch']
  %s0 = inlined_call_operand.vmem [shape: f32[2048,16], index: 0, kind: input, shape index: {}]
  %s1 = inlined_call_operand.vmem [shape: f32[8,16], index: 1, kind: input, shape index: {}]
  %s2 = inlined_call_operand.vmem [shape: f32[8,1], index: 2, kind: input, shape index: {}]
  %s3 = inlined_call_operand.vmem [shape: f32[8,8], index: 3, kind: input, shape index: {}]
  %s4 = inlined_call_operand.vmem [shape: f32[8,1], index: 4, kind: input, shape index: {}]
  %s5 = inlined_call_operand.vmem [shape: f32[8,8], index: 5, kind: input, shape index: {}]
  %s6 = inlined_call_operand.vmem [shape: f32[8,1], index: 6, kind: input, shape index: {}]
  %s7 = inlined_call_operand.vmem [shape: f32[8,8], index: 7, kind: input, shape index: {}]
  %s8 = inlined_call_operand.vmem [shape: f32[8,1], index: 8, kind: input, shape index: {}]
  %s9 = inlined_call_operand.vmem [shape: f32[8,16], index: 9, kind: input, shape index: {}]
  %s10 = inlined_call_operand.vmem [shape: f32[1,16], index: 10, kind: input, shape index: {}]
  %s11 = inlined_call_operand.vmem [shape: f32[2048,16], index: 11, kind: output, shape index: {}]
  %s12 = sld [smem:[#allocation0]]
  $region77: #{tpu_custom_call.1} parent=0
    _
  %s14 = ssub.s32 1, %s12
  %s15 = scalar_select 0, %s14, %s12
  loop: start=0, step=1, limit=6
  $region2: #{tpu_custom_call.1} parent=0 // loop_pre_header
    _
  $region3: #{tpu_custom_call.1} parent=0 // loop_header
    %s17 = sphi 0, %s21
    %p18 = scmp.ge.s32.totalorder %s17, 6
    %s27 = sphi 0, %s29
    %s30 = sphi 0, %s27
    %s31 = sphi 0, %s30
    %s47 = sphi 0, %s31
    %s51 = sphi 0, %s51
    %s53 = sphi 0, %s51
    %s54 = sphi 0, %s53
    %s68 = sphi 0, %s54
    %s72 = sphi 0, %s72
    %s74 = sphi 0, %s72
    %s75 = sphi 0, %s74
    %s89 = sphi 0, %s75
    %s93 = sphi 0, %s93
    %s95 = sphi 0, %s93
    %s96 = sphi 0, %s95
    %s110 = sphi 0, %s96
    %s114 = sphi 0, %s114
    %s116 = sphi 0, %s114
    %s117 = sphi 0, %s116
    %s131 = sphi 0, %s117
    %s135 = sphi 0, %s135
    %s137 = sphi 0, %s135
    %s138 = sphi 0, %s137
    %s152 = sphi 0, %s138
    %s156 = sphi 0, %s156
    %s158 = sphi 0, %s156
    %s159 = sphi 0, %s158
    %s173 = sphi 0, %s159
    %s177 = sphi 0, %s177
    %s179 = sphi 0, %s177
    %s180 = sphi 0, %s179
    %s194 = sphi 0, %s180
    %s198 = sphi 0, %s198
    %s200 = sphi 0, %s198
    %s201 = sphi 0, %s200
    %s215 = sphi 0, %s201
    %s219 = sphi 0, %s219
    %s221 = sphi 0, %s219
    %s222 = sphi 0, %s221
    %s236 = sphi 0, %s222
    %s240 = sphi 0, %s240
    %s242 = sphi 0, %s240
    %s243 = sphi 0, %s242
    %s257 = sphi 0, %s243
    %s263 = sphi 0, %s265
    %s266 = sphi 0, %s263
    %s267 = sphi 0, %s266
    %s283 = sphi 0, %s267
  $region4: #{tpu_custom_call.1} parent=0 // loop_header_branch
    %20 = sbr.rel (%p18) target = $region8
  $region5: #{tpu_custom_call.1} parent=0 // loop_body
    %s22 = ssub.s32 %s17, 1
    %s23 = ssub.s32 %s17, 2
    %s24 = sadd.s32 %s17, 1
    %s25 = ssub.s32 %s17, %s24
    %p26 = scmp.eq.s32.totalorder %s25, 0
    %s28 = sadd.s32 %s27, 1
    %s29 = scalar_select %p26, %s27, %s28
    %p32 = pneg %p26
    %p33 = scmp.eq.s32.totalorder %s17, 3
    %p34 = por %p32, %p33
    %p35 = scmp.ne.s32.totalorder %s27, %s30
    %p36 = scmp.eq.s32.totalorder %s17, 0
    %p37 = por %p35, %p36
    %p38 = scmp.ne.s32.totalorder %s27, %s30
    %p39 = scmp.eq.s32.totalorder %s22, 3
    %p40 = por %p38, %p39
    %p41 = scmp.ne.s32.totalorder %s30, %s31
    %p42 = scmp.eq.s32.totalorder %s22, 0
    %p43 = por %p41, %p42
    %p44 = scmp.ne.s32.totalorder %s30, %s31
    %p45 = scmp.eq.s32.totalorder %s23, 3
    %p46 = por %p44, %p45
    %p48 = scmp.ne.s32.totalorder %s31, %s47
    %p49 = scmp.eq.s32.totalorder %s23, 0
    %p50 = por %p48, %p49
    %s52 = sadd.s32 %s51, 1
    %p55 = scmp.eq.s32.totalorder %s17, 3
    %p56 = scmp.ne.s32.totalorder %s51, %s53
    %p57 = scmp.eq.s32.totalorder %s17, 0
    %p58 = por %p56, %p57
    %p59 = scmp.ne.s32.totalorder %s51, %s53
    %p60 = scmp.eq.s32.totalorder %s22, 3
    %p61 = por %p59, %p60
    %p62 = scmp.ne.s32.totalorder %s53, %s54
    %p63 = scmp.eq.s32.totalorder %s22, 0
    %p64 = por %p62, %p63
    %p65 = scmp.ne.s32.totalorder %s53, %s54
    %p66 = scmp.eq.s32.totalorder %s23, 3
    %p67 = por %p65, %p66
    %p69 = scmp.ne.s32.totalorder %s54, %s68
    %p70 = scmp.eq.s32.totalorder %s23, 0
    %p71 = por %p69, %p70
    %s73 = sadd.s32 %s72, 1
    %p76 = scmp.eq.s32.totalorder %s17, 3
    %p77 = scmp.ne.s32.totalorder %s72, %s74
    %p78 = scmp.eq.s32.totalorder %s17, 0
    %p79 = por %p77, %p78
    %p80 = scmp.ne.s32.totalorder %s72, %s74
    %p81 = scmp.eq.s32.totalorder %s22, 3
    %p82 = por %p80, %p81
    %p83 = scmp.ne.s32.totalorder %s74, %s75
    %p84 = scmp.eq.s32.totalorder %s22, 0
    %p85 = por %p83, %p84
    %p86 = scmp.ne.s32.totalorder %s74, %s75
    %p87 = scmp.eq.s32.totalorder %s23, 3
    %p88 = por %p86, %p87
    %p90 = scmp.ne.s32.totalorder %s75, %s89
    %p91 = scmp.eq.s32.totalorder %s23, 0
    %p92 = por %p90, %p91
    %s94 = sadd.s32 %s93, 1
    %p97 = scmp.eq.s32.totalorder %s17, 3
    %p98 = scmp.ne.s32.totalorder %s93, %s95
    %p99 = scmp.eq.s32.totalorder %s17, 0
    %p100 = por %p98, %p99
    %p101 = scmp.ne.s32.totalorder %s93, %s95
    %p102 = scmp.eq.s32.totalorder %s22, 3
    %p103 = por %p101, %p102
    %p104 = scmp.ne.s32.totalorder %s95, %s96
    %p105 = scmp.eq.s32.totalorder %s22, 0
    %p106 = por %p104, %p105
    %p107 = scmp.ne.s32.totalorder %s95, %s96
    %p108 = scmp.eq.s32.totalorder %s23, 3
    %p109 = por %p107, %p108
    %p111 = scmp.ne.s32.totalorder %s96, %s110
    %p112 = scmp.eq.s32.totalorder %s23, 0
    %p113 = por %p111, %p112
    %s115 = sadd.s32 %s114, 1
    %p118 = scmp.eq.s32.totalorder %s17, 3
    %p119 = scmp.ne.s32.totalorder %s114, %s116
    %p120 = scmp.eq.s32.totalorder %s17, 0
    %p121 = por %p119, %p120
    %p122 = scmp.ne.s32.totalorder %s114, %s116
    %p123 = scmp.eq.s32.totalorder %s22, 3
    %p124 = por %p122, %p123
    %p125 = scmp.ne.s32.totalorder %s116, %s117
    %p126 = scmp.eq.s32.totalorder %s22, 0
    %p127 = por %p125, %p126
    %p128 = scmp.ne.s32.totalorder %s116, %s117
    %p129 = scmp.eq.s32.totalorder %s23, 3
    %p130 = por %p128, %p129
    %p132 = scmp.ne.s32.totalorder %s117, %s131
    %p133 = scmp.eq.s32.totalorder %s23, 0
    %p134 = por %p132, %p133
    %s136 = sadd.s32 %s135, 1
    %p139 = scmp.eq.s32.totalorder %s17, 3
    %p140 = scmp.ne.s32.totalorder %s135, %s137
    %p141 = scmp.eq.s32.totalorder %s17, 0
    %p142 = por %p140, %p141
    %p143 = scmp.ne.s32.totalorder %s135, %s137
    %p144 = scmp.eq.s32.totalorder %s22, 3
    %p145 = por %p143, %p144
    %p146 = scmp.ne.s32.totalorder %s137, %s138
    %p147 = scmp.eq.s32.totalorder %s22, 0
    %p148 = por %p146, %p147
    %p149 = scmp.ne.s32.totalorder %s137, %s138
    %p150 = scmp.eq.s32.totalorder %s23, 3
    %p151 = por %p149, %p150
    %p153 = scmp.ne.s32.totalorder %s138, %s152
    %p154 = scmp.eq.s32.totalorder %s23, 0
    %p155 = por %p153, %p154
    %s157 = sadd.s32 %s156, 1
    %p160 = scmp.eq.s32.totalorder %s17, 3
    %p161 = scmp.ne.s32.totalorder %s156, %s158
    %p162 = scmp.eq.s32.totalorder %s17, 0
    %p163 = por %p161, %p162
    %p164 = scmp.ne.s32.totalorder %s156, %s158
    %p165 = scmp.eq.s32.totalorder %s22, 3
    %p166 = por %p164, %p165
    %p167 = scmp.ne.s32.totalorder %s158, %s159
    %p168 = scmp.eq.s32.totalorder %s22, 0
    %p169 = por %p167, %p168
    %p170 = scmp.ne.s32.totalorder %s158, %s159
    %p171 = scmp.eq.s32.totalorder %s23, 3
    %p172 = por %p170, %p171
    %p174 = scmp.ne.s32.totalorder %s159, %s173
    %p175 = scmp.eq.s32.totalorder %s23, 0
    %p176 = por %p174, %p175
    %s178 = sadd.s32 %s177, 1
    %p181 = scmp.eq.s32.totalorder %s17, 3
    %p182 = scmp.ne.s32.totalorder %s177, %s179
    %p183 = scmp.eq.s32.totalorder %s17, 0
    %p184 = por %p182, %p183
    %p185 = scmp.ne.s32.totalorder %s177, %s179
    %p186 = scmp.eq.s32.totalorder %s22, 3
    %p187 = por %p185, %p186
    %p188 = scmp.ne.s32.totalorder %s179, %s180
    %p189 = scmp.eq.s32.totalorder %s22, 0
    %p190 = por %p188, %p189
    %p191 = scmp.ne.s32.totalorder %s179, %s180
    %p192 = scmp.eq.s32.totalorder %s23, 3
    %p193 = por %p191, %p192
    %p195 = scmp.ne.s32.totalorder %s180, %s194
    %p196 = scmp.eq.s32.totalorder %s23, 0
    %p197 = por %p195, %p196
    %s199 = sadd.s32 %s198, 1
    %p202 = scmp.eq.s32.totalorder %s17, 3
    %p203 = scmp.ne.s32.totalorder %s198, %s200
    %p204 = scmp.eq.s32.totalorder %s17, 0
    %p205 = por %p203, %p204
    %p206 = scmp.ne.s32.totalorder %s198, %s200
    %p207 = scmp.eq.s32.totalorder %s22, 3
    %p208 = por %p206, %p207
    %p209 = scmp.ne.s32.totalorder %s200, %s201
    %p210 = scmp.eq.s32.totalorder %s22, 0
    %p211 = por %p209, %p210
    %p212 = scmp.ne.s32.totalorder %s200, %s201
    %p213 = scmp.eq.s32.totalorder %s23, 3
    %p214 = por %p212, %p213
    %p216 = scmp.ne.s32.totalorder %s201, %s215
    %p217 = scmp.eq.s32.totalorder %s23, 0
    %p218 = por %p216, %p217
    %s220 = sadd.s32 %s219, 1
    %p223 = scmp.eq.s32.totalorder %s17, 3
    %p224 = scmp.ne.s32.totalorder %s219, %s221
    %p225 = scmp.eq.s32.totalorder %s17, 0
    %p226 = por %p224, %p225
    %p227 = scmp.ne.s32.totalorder %s219, %s221
    %p228 = scmp.eq.s32.totalorder %s22, 3
    %p229 = por %p227, %p228
    %p230 = scmp.ne.s32.totalorder %s221, %s222
    %p231 = scmp.eq.s32.totalorder %s22, 0
    %p232 = por %p230, %p231
    %p233 = scmp.ne.s32.totalorder %s221, %s222
    %p234 = scmp.eq.s32.totalorder %s23, 3
    %p235 = por %p233, %p234
    %p237 = scmp.ne.s32.totalorder %s222, %s236
    %p238 = scmp.eq.s32.totalorder %s23, 0
    %p239 = por %p237, %p238
    %s241 = sadd.s32 %s240, 1
    %p244 = scmp.eq.s32.totalorder %s17, 3
    %p245 = scmp.ne.s32.totalorder %s240, %s242
    %p246 = scmp.eq.s32.totalorder %s17, 0
    %p247 = por %p245, %p246
    %p248 = scmp.ne.s32.totalorder %s240, %s242
    %p249 = scmp.eq.s32.totalorder %s22, 3
    %p250 = por %p248, %p249
    %p251 = scmp.ne.s32.totalorder %s242, %s243
    %p252 = scmp.eq.s32.totalorder %s22, 0
    %p253 = por %p251, %p252
    %p254 = scmp.ne.s32.totalorder %s242, %s243
    %p255 = scmp.eq.s32.totalorder %s23, 3
    %p256 = por %p254, %p255
    %p258 = scmp.ne.s32.totalorder %s243, %s257
    %p259 = scmp.eq.s32.totalorder %s23, 0
    %p260 = por %p258, %p259
    %s261 = ssub.s32 %s17, %s24
    %p262 = scmp.eq.s32.totalorder %s261, 0
    %s264 = sadd.s32 %s263, 1
    %s265 = scalar_select %p262, %s263, %s264
    %p268 = pneg %p262
    %p269 = scmp.eq.s32.totalorder %s17, 3
    %p270 = por %p268, %p269
    %p271 = scmp.ne.s32.totalorder %s263, %s266
    %p272 = scmp.eq.s32.totalorder %s17, 0
    %p273 = por %p271, %p272
    %p274 = scmp.ne.s32.totalorder %s263, %s266
    %p275 = scmp.eq.s32.totalorder %s22, 3
    %p276 = por %p274, %p275
    %p277 = scmp.ne.s32.totalorder %s266, %s267
    %p278 = scmp.eq.s32.totalorder %s22, 0
    %p279 = por %p277, %p278
    %p280 = scmp.ne.s32.totalorder %s266, %s267
    %p281 = scmp.eq.s32.totalorder %s23, 3
    %p282 = por %p280, %p281
    %p284 = scmp.ne.s32.totalorder %s267, %s283
    %p285 = scmp.eq.s32.totalorder %s23, 0
    %p286 = por %p284, %p285
    %p287 = scmp.le.s32.totalorder 1, %s17
    %p288 = scmp.lt.s32.totalorder %s17, 5
    %p289 = pnand %p287, %p288
    %p290 = pneg %p289
    // Predicated region
    $region9: #{tpu_custom_call.1} parent=5 // pred_check
      _
    $region10: #{tpu_custom_call.1} parent=5 // pred_check_branch
      %292 = sbr.rel (%p289) target = $region12
    $region11: #{tpu_custom_call.1} parent=5 // pred_region
      %s293 = ssub.s32 %s17, 1
      // Predicated region
      $region13: #{tpu_custom_call.1} parent=11 // pred_check
        %p294 = pneg %p64
      $region14: #{tpu_custom_call.1} parent=11 // pred_check_branch
        %296 = sbr.rel (%p294) target = $region16
      $region15: #{tpu_custom_call.1} parent=11 // pred_region
        _
      $region16: #{tpu_custom_call.1} parent=11 // pred_fallthru
        _
      // Predicated region
      $region17: #{tpu_custom_call.1} parent=11 // pred_check
        %p297 = pneg %p85
      $region18: #{tpu_custom_call.1} parent=11 // pred_check_branch
        %299 = sbr.rel (%p297) target = $region20
      $region19: #{tpu_custom_call.1} parent=11 // pred_region
        _
      $region20: #{tpu_custom_call.1} parent=11 // pred_fallthru
        _
      // Predicated region
      $region21: #{tpu_custom_call.1} parent=11 // pred_check
        %p300 = pneg %p106
      $region22: #{tpu_custom_call.1} parent=11 // pred_check_branch
        %302 = sbr.rel (%p300) target = $region24
      $region23: #{tpu_custom_call.1} parent=11 // pred_region
        _
      $region24: #{tpu_custom_call.1} parent=11 // pred_fallthru
        _
      // Predicated region
      $region25: #{tpu_custom_call.1} parent=11 // pred_check
        %p303 = pneg %p127
      $region26: #{tpu_custom_call.1} parent=11 // pred_check_branch
        %305 = sbr.rel (%p303) target = $region28
      $region27: #{tpu_custom_call.1} parent=11 // pred_region
        _
      $region28: #{tpu_custom_call.1} parent=11 // pred_fallthru
        _
      // Predicated region
      $region29: #{tpu_custom_call.1} parent=11 // pred_check
        %p306 = pneg %p148
      $region30: #{tpu_custom_call.1} parent=11 // pred_check_branch
        %308 = sbr.rel (%p306) target = $region32
      $region31: #{tpu_custom_call.1} parent=11 // pred_region
        _
      $region32: #{tpu_custom_call.1} parent=11 // pred_fallthru
        _
      // Predicated region
      $region33: #{tpu_custom_call.1} parent=11 // pred_check
        %p309 = pneg %p169
      $region34: #{tpu_custom_call.1} parent=11 // pred_check_branch
        %311 = sbr.rel (%p309) target = $region36
      $region35: #{tpu_custom_call.1} parent=11 // pred_region
        _
      $region36: #{tpu_custom_call.1} parent=11 // pred_fallthru
        _
      // Predicated region
      $region37: #{tpu_custom_call.1} parent=11 // pred_check
        %p312 = pneg %p190
      $region38: #{tpu_custom_call.1} parent=11 // pred_check_branch
        %314 = sbr.rel (%p312) target = $region40
      $region39: #{tpu_custom_call.1} parent=11 // pred_region
        _
      $region40: #{tpu_custom_call.1} parent=11 // pred_fallthru
        _
      // Predicated region
      $region41: #{tpu_custom_call.1} parent=11 // pred_check
        %p315 = pneg %p211
      $region42: #{tpu_custom_call.1} parent=11 // pred_check_branch
        %317 = sbr.rel (%p315) target = $region44
      $region43: #{tpu_custom_call.1} parent=11 // pred_region
        _
      $region44: #{tpu_custom_call.1} parent=11 // pred_fallthru
        _
      // Predicated region
      $region45: #{tpu_custom_call.1} parent=11 // pred_check
        %p318 = pneg %p232
      $region46: #{tpu_custom_call.1} parent=11 // pred_check_branch
        %320 = sbr.rel (%p318) target = $region48
      $region47: #{tpu_custom_call.1} parent=11 // pred_region
        _
      $region48: #{tpu_custom_call.1} parent=11 // pred_fallthru
        _
      // Predicated region
      $region49: #{tpu_custom_call.1} parent=11 // pred_check
        %p321 = pneg %p253
      $region50: #{tpu_custom_call.1} parent=11 // pred_check_branch
        %323 = sbr.rel (%p321) target = $region52
      $region51: #{tpu_custom_call.1} parent=11 // pred_region
        _
      $region52: #{tpu_custom_call.1} parent=11 // pred_fallthru
        _
    $region12: #{tpu_custom_call.1} parent=5 // pred_fallthru
      _
    %p324 = scmp.lt.s32.totalorder %s17, 4
    // Predicated region
    $region53: #{tpu_custom_call.1} parent=5 // pred_check
      %p325 = pneg %p324
    $region54: #{tpu_custom_call.1} parent=5 // pred_check_branch
      %327 = sbr.rel (%p325) target = $region56
    $region55: #{tpu_custom_call.1} parent=5 // pred_region
      // Predicated region
      $region57: #{tpu_custom_call.1} parent=55 // pred_check
        %p328 = pneg %p37
      $region58: #{tpu_custom_call.1} parent=55 // pred_check_branch
        %330 = sbr.rel (%p328) target = $region60
      $region59: #{tpu_custom_call.1} parent=55 // pred_region
        %s331 = smul.u32 64, %s17
        %p332 = scmp.lt.s32.totalorder %s331, 255
        %s333 = scalar_select %p332, %s331, 255
        %s334 = smul.addr %s333, 8
        %s335 = scalar_lea.vmem %s0, %s334
        %s336 = smul.u32 64, %s17
      $region60: #{tpu_custom_call.1} parent=55 // pred_fallthru
        _
    $region56: #{tpu_custom_call.1} parent=5 // pred_fallthru
      _
    %p337 = scmp.le.s32.totalorder 1, %s17
    %p338 = scmp.lt.s32.totalorder %s17, 5
    %p339 = pnand %p337, %p338
    %p340 = pneg %p339
    // Predicated region
    $region61: #{tpu_custom_call.1} parent=5 // pred_check
      _
    $region62: #{tpu_custom_call.1} parent=5 // pred_check_branch
      %342 = sbr.rel (%p339) target = $region64
    $region63: #{tpu_custom_call.1} parent=5 // pred_region
      %s343 = ssub.s32 %s17, 1
      %s344 = smul.u32 64, %s22
      %p345 = scmp.lt.s32.totalorder %s344, 255
      %s346 = scalar_select %p345, %s344, 255
      %s347 = smul.addr %s346, 8
      %s348 = scalar_lea.vmem %s0, %s347
      %p349 = pneg %p43
      %p350 = pneg %p40
      %p351 = pneg %p64
      %p352 = pneg %p61
      %p353 = pneg %p85
      %p354 = pneg %p82
      %p355 = pneg %p106
      %p356 = pneg %p103
      %p357 = pneg %p127
      %p358 = pneg %p124
      %p359 = pneg %p148
      %p360 = pneg %p145
      %p361 = pneg %p169
      %p362 = pneg %p166
      %p363 = pneg %p190
      %p364 = pneg %p187
      %p365 = pneg %p211
      %p366 = pneg %p208
      %p367 = pneg %p232
      %p368 = pneg %p229
      %p369 = pneg %p253
      %p370 = pneg %p250
      %p371 = pneg %p279
      %p372 = pneg %p276
      %s373 = smul.u32 64, %s22
      %p374 = scmp.lt.s32.totalorder %s373, 255
      %s375 = scalar_select %p374, %s373, 255
      %s376 = smul.addr %s375, 8
      %s377 = scalar_lea.vmem %s11, %s376
      %s378 = smul.u32 64, %s22
      %p379 = scmp.lt.s32.totalorder %s378, 255
      %s380 = scalar_select %p379, %s378, 255
      %s381 = smul.addr %s380, 8
      %s382 = scalar_lea.vmem %s0, %s381
      %s383 = smul.u32 64, %s22
      %s384 = smul.u32 64, %s22
      %p385 = scmp.lt.s32.totalorder %s384, 255
      %s386 = scalar_select %p385, %s384, 255
      %s387 = smul.addr %s386, 8
      %s388 = scalar_lea.vmem %s11, %s387
      %s389 = smul.u32 64, %s22
      %v390 = vld [vmem:[%s382] sm:$0xff]
      %v391 = vld [vmem:[%s382 + $0x8] sm:$0xff]
      %v392 = vld [vmem:[%s382 + $0x10] sm:$0xff]
      %v393 = vld [vmem:[%s382 + $0x18] sm:$0xff]
      %v394 = vld [vmem:[%s382 + $0x20] sm:$0xff]
      %v395 = vld [vmem:[%s382 + $0x28] sm:$0xff]
      %v396 = vld [vmem:[%s382 + $0x30] sm:$0xff]
      %v397 = vld [vmem:[%s382 + $0x38] sm:$0xff]
      %v398 = vld [vmem:[%s382 + $0x40] sm:$0xff]
      %v399 = vld [vmem:[%s382 + $0x48] sm:$0xff]
      %v400 = vld [vmem:[%s382 + $0x50] sm:$0xff]
      %v401 = vld [vmem:[%s382 + $0x58] sm:$0xff]
      %v402 = vld [vmem:[%s382 + $0x60] sm:$0xff]
      %v403 = vld [vmem:[%s382 + $0x68] sm:$0xff]
      %v404 = vld [vmem:[%s382 + $0x70] sm:$0xff]
      %v405 = vld [vmem:[%s382 + $0x78] sm:$0xff]
      %v406 = vld [vmem:[%s382 + $0x80] sm:$0xff]
      %v407 = vld [vmem:[%s382 + $0x88] sm:$0xff]
      %v408 = vld [vmem:[%s382 + $0x90] sm:$0xff]
      %v409 = vld [vmem:[%s382 + $0x98] sm:$0xff]
      %v410 = vld [vmem:[%s382 + $0xa0] sm:$0xff]
      %v411 = vld [vmem:[%s382 + $0xa8] sm:$0xff]
      %v412 = vld [vmem:[%s382 + $0xb0] sm:$0xff]
      %v413 = vld [vmem:[%s382 + $0xb8] sm:$0xff]
      %v414 = vld [vmem:[%s382 + $0xc0] sm:$0xff]
      %v415 = vld [vmem:[%s382 + $0xc8] sm:$0xff]
      %v416 = vld [vmem:[%s382 + $0xd0] sm:$0xff]
      %v417 = vld [vmem:[%s382 + $0xd8] sm:$0xff]
      %v418 = vld [vmem:[%s382 + $0xe0] sm:$0xff]
      %v419 = vld [vmem:[%s382 + $0xe8] sm:$0xff]
      %v420 = vld [vmem:[%s382 + $0xf0] sm:$0xff]
      %v421 = vld [vmem:[%s382 + $0xf8] sm:$0xff]
      %v422 = vld [vmem:[%s382 + $0x100] sm:$0xff]
      %v423 = vld [vmem:[%s382 + $0x108] sm:$0xff]
      %v424 = vld [vmem:[%s382 + $0x110] sm:$0xff]
      %v425 = vld [vmem:[%s382 + $0x118] sm:$0xff]
      %v426 = vld [vmem:[%s382 + $0x120] sm:$0xff]
      %v427 = vld [vmem:[%s382 + $0x128] sm:$0xff]
      %v428 = vld [vmem:[%s382 + $0x130] sm:$0xff]
      %v429 = vld [vmem:[%s382 + $0x138] sm:$0xff]
      %v430 = vld [vmem:[%s382 + $0x140] sm:$0xff]
      %v431 = vld [vmem:[%s382 + $0x148] sm:$0xff]
      %v432 = vld [vmem:[%s382 + $0x150] sm:$0xff]
      %v433 = vld [vmem:[%s382 + $0x158] sm:$0xff]
      %v434 = vld [vmem:[%s382 + $0x160] sm:$0xff]
      %v435 = vld [vmem:[%s382 + $0x168] sm:$0xff]
      %v436 = vld [vmem:[%s382 + $0x170] sm:$0xff]
      %v437 = vld [vmem:[%s382 + $0x178] sm:$0xff]
      %v438 = vld [vmem:[%s382 + $0x180] sm:$0xff]
      %v439 = vld [vmem:[%s382 + $0x188] sm:$0xff]
      %v440 = vld [vmem:[%s382 + $0x190] sm:$0xff]
      %v441 = vld [vmem:[%s382 + $0x198] sm:$0xff]
      %v442 = vld [vmem:[%s382 + $0x1a0] sm:$0xff]
      %v443 = vld [vmem:[%s382 + $0x1a8] sm:$0xff]
      %v444 = vld [vmem:[%s382 + $0x1b0] sm:$0xff]
      %v445 = vld [vmem:[%s382 + $0x1b8] sm:$0xff]
      %v446 = vld [vmem:[%s382 + $0x1c0] sm:$0xff]
      %v447 = vld [vmem:[%s382 + $0x1c8] sm:$0xff]
      %v448 = vld [vmem:[%s382 + $0x1d0] sm:$0xff]
      %v449 = vld [vmem:[%s382 + $0x1d8] sm:$0xff]
      %v450 = vld [vmem:[%s382 + $0x1e0] sm:$0xff]
      %v451 = vld [vmem:[%s382 + $0x1e8] sm:$0xff]
      %v452 = vld [vmem:[%s382 + $0x1f0] sm:$0xff]
      %v453 = vld [vmem:[%s382 + $0x1f8] sm:$0xff]
      %v454 = vld [vmem:[%s1] sm:$0xff]
      %v455 = vld [vmem:[%s2] sm:$0xff]
      %457 = vset.pattern.permute.xlu0 0
      %458 = vperm.xlu0 %457, %v455
      %v459 = vpop.permute.xlu0 %458
      %vm461 = vcmask 130048
      %v463 = vsel %vm461, %v454, 0
      %v466 = vsel %vm461, %v390, 0
      %v469 = vsel %vm461, %v391, 0
      %v472 = vsel %vm461, %v392, 0
      %v475 = vsel %vm461, %v393, 0
      %v478 = vsel %vm461, %v394, 0
      %v481 = vsel %vm461, %v395, 0
      %v484 = vsel %vm461, %v396, 0
      %v487 = vsel %vm461, %v397, 0
      %v490 = vsel %vm461, %v398, 0
      %v493 = vsel %vm461, %v399, 0
      %v496 = vsel %vm461, %v400, 0
      %v499 = vsel %vm461, %v401, 0
      %v502 = vsel %vm461, %v402, 0
      %v505 = vsel %vm461, %v403, 0
      %v508 = vsel %vm461, %v404, 0
      %v511 = vsel %vm461, %v405, 0
      %v514 = vsel %vm461, %v406, 0
      %v517 = vsel %vm461, %v407, 0
      %v520 = vsel %vm461, %v408, 0
      %v523 = vsel %vm461, %v409, 0
      %v526 = vsel %vm461, %v410, 0
      %v529 = vsel %vm461, %v411, 0
      %v532 = vsel %vm461, %v412, 0
      %v535 = vsel %vm461, %v413, 0
      %v538 = vsel %vm461, %v414, 0
      %v541 = vsel %vm461, %v415, 0
      %v544 = vsel %vm461, %v416, 0
      %v547 = vsel %vm461, %v417, 0
      %v550 = vsel %vm461, %v418, 0
      %v553 = vsel %vm461, %v419, 0
      %v556 = vsel %vm461, %v420, 0
      %v559 = vsel %vm461, %v421, 0
      %v562 = vsel %vm461, %v422, 0
      %v565 = vsel %vm461, %v423, 0
      %v568 = vsel %vm461, %v424, 0
      %v571 = vsel %vm461, %v425, 0
      %v574 = vsel %vm461, %v426, 0
      %v577 = vsel %vm461, %v427, 0
      %v580 = vsel %vm461, %v428, 0
      %v583 = vsel %vm461, %v429, 0
      %v586 = vsel %vm461, %v430, 0
      %v589 = vsel %vm461, %v431, 0
      %v592 = vsel %vm461, %v432, 0
      %v595 = vsel %vm461, %v433, 0
      %v598 = vsel %vm461, %v434, 0
      %v601 = vsel %vm461, %v435, 0
      %v604 = vsel %vm461, %v436, 0
      %v607 = vsel %vm461, %v437, 0
      %v610 = vsel %vm461, %v438, 0
      %v613 = vsel %vm461, %v439, 0
      %v616 = vsel %vm461, %v440, 0
      %v619 = vsel %vm461, %v441, 0
      %v622 = vsel %vm461, %v442, 0
      %v625 = vsel %vm461, %v443, 0
      %v628 = vsel %vm461, %v444, 0
      %v631 = vsel %vm461, %v445, 0
      %v634 = vsel %vm461, %v446, 0
      %v637 = vsel %vm461, %v447, 0
      %v640 = vsel %vm461, %v448, 0
      %v643 = vsel %vm461, %v449, 0
      %v646 = vsel %vm461, %v450, 0
      %v649 = vsel %vm461, %v451, 0
      %v652 = vsel %vm461, %v452, 0
      %v655 = vsel %vm461, %v453, 0
      %657 = vmatpush.xpose.msra.mxu0 %v511
      %658 = vmatpush.xpose.msra.mxu0 %v508
      %659 = vmatpush.xpose.msra.mxu0 %v505
      %660 = vmatpush.xpose.msra.mxu0 %v502
      %661 = vmatpush.xpose.msra.mxu0 %v499
      %662 = vmatpush.xpose.msra.mxu0 %v496
      %663 = vmatpush.xpose.msra.mxu0 %v493
      %664 = vmatpush.xpose.msra.mxu0 %v490
      %665 = vmatpush.xpose.msra.mxu0 %v487
      %666 = vmatpush.xpose.msra.mxu0 %v484
      %667 = vmatpush.xpose.msra.mxu0 %v481
      %668 = vmatpush.xpose.msra.mxu0 %v478
      %669 = vmatpush.xpose.msra.mxu0 %v475
      %670 = vmatpush.xpose.msra.mxu0 %v472
      %671 = vmatpush.xpose.msra.mxu0 %v469
      %672 = vmatpush.xpose.msra.mxu0 %v466
      %673 = vmatmul.f32.gmra.mxu0 %v463
      %v674 = vpop.f32.mrf.mxu0
      %v675 = vadd.f32 %v459, %v674
      %676 = vdwg.mxu0
      %677 = vmatpush.xpose.msra.mxu0 %v559
      %678 = vmatpush.xpose.msra.mxu0 %v556
      %679 = vmatpush.xpose.msra.mxu0 %v553
      %680 = vmatpush.xpose.msra.mxu0 %v550
      %681 = vmatpush.xpose.msra.mxu0 %v547
      %682 = vmatpush.xpose.msra.mxu0 %v544
      %683 = vmatpush.xpose.msra.mxu0 %v541
      %684 = vmatpush.xpose.msra.mxu0 %v538
      %685 = vmatpush.xpose.msra.mxu0 %v535
      %686 = vmatpush.xpose.msra.mxu0 %v532
      %687 = vmatpush.xpose.msra.mxu0 %v529
      %688 = vmatpush.xpose.msra.mxu0 %v526
      %689 = vmatpush.xpose.msra.mxu0 %v523
      %690 = vmatpush.xpose.msra.mxu0 %v520
      %691 = vmatpush.xpose.msra.mxu0 %v517
      %692 = vmatpush.xpose.msra.mxu0 %v514
      %693 = vmatmul.f32.gmra.mxu0 %v463
      %v694 = vpop.f32.mrf.mxu0
      %v695 = vadd.f32 %v459, %v694
      %696 = vdwg.mxu0
      %697 = vmatpush.xpose.msra.mxu0 %v607
      %698 = vmatpush.xpose.msra.mxu0 %v604
      %699 = vmatpush.xpose.msra.mxu0 %v601
      %700 = vmatpush.xpose.msra.mxu0 %v598
      %701 = vmatpush.xpose.msra.mxu0 %v595
      %702 = vmatpush.xpose.msra.mxu0 %v592
      %703 = vmatpush.xpose.msra.mxu0 %v589
      %704 = vmatpush.xpose.msra.mxu0 %v586
      %705 = vmatpush.xpose.msra.mxu0 %v583
      %706 = vmatpush.xpose.msra.mxu0 %v580
      %707 = vmatpush.xpose.msra.mxu0 %v577
      %708 = vmatpush.xpose.msra.mxu0 %v574
      %709 = vmatpush.xpose.msra.mxu0 %v571
      %710 = vmatpush.xpose.msra.mxu0 %v568
      %711 = vmatpush.xpose.msra.mxu0 %v565
      %712 = vmatpush.xpose.msra.mxu0 %v562
      %713 = vmatmul.f32.gmra.mxu0 %v463
      %v714 = vpop.f32.mrf.mxu0
      %v715 = vadd.f32 %v459, %v714
      %716 = vdwg.mxu0
      %717 = vmatpush.xpose.msra.mxu0 %v655
      %718 = vmatpush.xpose.msra.mxu0 %v652
      %719 = vmatpush.xpose.msra.mxu0 %v649
      %720 = vmatpush.xpose.msra.mxu0 %v646
      %721 = vmatpush.xpose.msra.mxu0 %v643
      %722 = vmatpush.xpose.msra.mxu0 %v640
      %723 = vmatpush.xpose.msra.mxu0 %v637
      %724 = vmatpush.xpose.msra.mxu0 %v634
      %725 = vmatpush.xpose.msra.mxu0 %v631
      %726 = vmatpush.xpose.msra.mxu0 %v628
      %727 = vmatpush.xpose.msra.mxu0 %v625
      %728 = vmatpush.xpose.msra.mxu0 %v622
      %729 = vmatpush.xpose.msra.mxu0 %v619
      %730 = vmatpush.xpose.msra.mxu0 %v616
      %731 = vmatpush.xpose.msra.mxu0 %v613
      %732 = vmatpush.xpose.msra.mxu0 %v610
      %733 = vmatmul.f32.gmra.mxu0 %v463
      %v734 = vpop.f32.mrf.mxu0
      %v735 = vadd.f32 %v459, %v734
      %736 = vdwg.mxu0
      %v737 = vtanh.pop %v675
      %v738 = vtanh.pop %v695
      %v739 = vtanh.pop %v715
      %v740 = vtanh.pop %v735
      %v741 = vld [vmem:[%s3] sm:$0xff]
      %v742 = vld [vmem:[%s4] sm:$0xff]
      %744 = vset.pattern.permute.xlu0 0
      %745 = vperm.xlu0 %744, %v742
      %v746 = vpop.permute.xlu0 %745
      %vm748 = vcmask 64512
      %v750 = vsel %vm748, %v741, 0
      %752 = vmatpush.msra.mxu0 0.0
      %753 = vmatpush.msra.mxu0 0.0
      %754 = vmatpush.msra.mxu0 0.0
      %755 = vmatpush.msra.mxu0 0.0
      %756 = vmatpush.msra.mxu0 0.0
      %757 = vmatpush.msra.mxu0 0.0
      %758 = vmatpush.msra.mxu0 0.0
      %759 = vmatpush.msra.mxu0 0.0
      %760 = vmatpush.msra.mxu0 0.0
      %761 = vmatpush.msra.mxu0 0.0
      %762 = vmatpush.msra.mxu0 0.0
      %763 = vmatpush.msra.mxu0 0.0
      %764 = vmatpush.msra.mxu0 0.0
      %765 = vmatpush.msra.mxu0 0.0
      %766 = vmatpush.msra.mxu0 0.0
      %767 = vmatpush.msra.mxu0 %v737
      %768 = vmatmul.f32.gmra.mxu0 %v750
      %v769 = vpop.f32.mrf.mxu0
      %v770 = vadd.f32 %v746, %v769
      %771 = vdwg.mxu0
      %772 = vmatpush.msra.mxu0 0.0
      %773 = vmatpush.msra.mxu0 0.0
      %774 = vmatpush.msra.mxu0 0.0
      %775 = vmatpush.msra.mxu0 0.0
      %776 = vmatpush.msra.mxu0 0.0
      %777 = vmatpush.msra.mxu0 0.0
      %778 = vmatpush.msra.mxu0 0.0
      %779 = vmatpush.msra.mxu0 0.0
      %780 = vmatpush.msra.mxu0 0.0
      %781 = vmatpush.msra.mxu0 0.0
      %782 = vmatpush.msra.mxu0 0.0
      %783 = vmatpush.msra.mxu0 0.0
      %784 = vmatpush.msra.mxu0 0.0
      %785 = vmatpush.msra.mxu0 0.0
      %786 = vmatpush.msra.mxu0 0.0
      %787 = vmatpush.msra.mxu0 %v738
      %788 = vmatmul.f32.gmra.mxu0 %v750
      %v789 = vpop.f32.mrf.mxu0
      %v790 = vadd.f32 %v746, %v789
      %791 = vdwg.mxu0
      %792 = vmatpush.msra.mxu0 0.0
      %793 = vmatpush.msra.mxu0 0.0
      %794 = vmatpush.msra.mxu0 0.0
      %795 = vmatpush.msra.mxu0 0.0
      %796 = vmatpush.msra.mxu0 0.0
      %797 = vmatpush.msra.mxu0 0.0
      %798 = vmatpush.msra.mxu0 0.0
      %799 = vmatpush.msra.mxu0 0.0
      %800 = vmatpush.msra.mxu0 0.0
      %801 = vmatpush.msra.mxu0 0.0
      %802 = vmatpush.msra.mxu0 0.0
      %803 = vmatpush.msra.mxu0 0.0
      %804 = vmatpush.msra.mxu0 0.0
      %805 = vmatpush.msra.mxu0 0.0
      %806 = vmatpush.msra.mxu0 0.0
      %807 = vmatpush.msra.mxu0 %v739
      %808 = vmatmul.f32.gmra.mxu0 %v750
      %v809 = vpop.f32.mrf.mxu0
      %v810 = vadd.f32 %v746, %v809
      %811 = vdwg.mxu0
      %812 = vmatpush.msra.mxu0 0.0
      %813 = vmatpush.msra.mxu0 0.0
      %814 = vmatpush.msra.mxu0 0.0
      %815 = vmatpush.msra.mxu0 0.0
      %816 = vmatpush.msra.mxu0 0.0
      %817 = vmatpush.msra.mxu0 0.0
      %818 = vmatpush.msra.mxu0 0.0
      %819 = vmatpush.msra.mxu0 0.0
      %820 = vmatpush.msra.mxu0 0.0
      %821 = vmatpush.msra.mxu0 0.0
      %822 = vmatpush.msra.mxu0 0.0
      %823 = vmatpush.msra.mxu0 0.0
      %824 = vmatpush.msra.mxu0 0.0
      %825 = vmatpush.msra.mxu0 0.0
      %826 = vmatpush.msra.mxu0 0.0
      %827 = vmatpush.msra.mxu0 %v740
      %828 = vmatmul.f32.gmra.mxu0 %v750
      %v829 = vpop.f32.mrf.mxu0
      %v830 = vadd.f32 %v746, %v829
      %831 = vdwg.mxu0
      %v832 = vtanh.pop %v770
      %v833 = vtanh.pop %v790
      %v834 = vtanh.pop %v810
      %v835 = vtanh.pop %v830
      %v836 = vld [vmem:[%s5] sm:$0xff]
      %v837 = vld [vmem:[%s6] sm:$0xff]
      %839 = vset.pattern.permute.xlu0 0
      %840 = vperm.xlu0 %839, %v837
      %v841 = vpop.permute.xlu0 %840
      %v844 = vsel %vm748, %v836, 0
      %846 = vmatpush.msra.mxu0 0.0
      %847 = vmatpush.msra.mxu0 0.0
      %848 = vmatpush.msra.mxu0 0.0
      %849 = vmatpush.msra.mxu0 0.0
      %850 = vmatpush.msra.mxu0 0.0
      %851 = vmatpush.msra.mxu0 0.0
      %852 = vmatpush.msra.mxu0 0.0
      %853 = vmatpush.msra.mxu0 0.0
      %854 = vmatpush.msra.mxu0 0.0
      %855 = vmatpush.msra.mxu0 0.0
      %856 = vmatpush.msra.mxu0 0.0
      %857 = vmatpush.msra.mxu0 0.0
      %858 = vmatpush.msra.mxu0 0.0
      %859 = vmatpush.msra.mxu0 0.0
      %860 = vmatpush.msra.mxu0 0.0
      %861 = vmatpush.msra.mxu0 %v832
      %862 = vmatmul.f32.gmra.mxu0 %v844
      %v863 = vpop.f32.mrf.mxu0
      %v864 = vadd.f32 %v841, %v863
      %865 = vdwg.mxu0
      %866 = vmatpush.msra.mxu0 0.0
      %867 = vmatpush.msra.mxu0 0.0
      %868 = vmatpush.msra.mxu0 0.0
      %869 = vmatpush.msra.mxu0 0.0
      %870 = vmatpush.msra.mxu0 0.0
      %871 = vmatpush.msra.mxu0 0.0
      %872 = vmatpush.msra.mxu0 0.0
      %873 = vmatpush.msra.mxu0 0.0
      %874 = vmatpush.msra.mxu0 0.0
      %875 = vmatpush.msra.mxu0 0.0
      %876 = vmatpush.msra.mxu0 0.0
      %877 = vmatpush.msra.mxu0 0.0
      %878 = vmatpush.msra.mxu0 0.0
      %879 = vmatpush.msra.mxu0 0.0
      %880 = vmatpush.msra.mxu0 0.0
      %881 = vmatpush.msra.mxu0 %v833
      %882 = vmatmul.f32.gmra.mxu0 %v844
      %v883 = vpop.f32.mrf.mxu0
      %v884 = vadd.f32 %v841, %v883
      %885 = vdwg.mxu0
      %886 = vmatpush.msra.mxu0 0.0
      %887 = vmatpush.msra.mxu0 0.0
      %888 = vmatpush.msra.mxu0 0.0
      %889 = vmatpush.msra.mxu0 0.0
      %890 = vmatpush.msra.mxu0 0.0
      %891 = vmatpush.msra.mxu0 0.0
      %892 = vmatpush.msra.mxu0 0.0
      %893 = vmatpush.msra.mxu0 0.0
      %894 = vmatpush.msra.mxu0 0.0
      %895 = vmatpush.msra.mxu0 0.0
      %896 = vmatpush.msra.mxu0 0.0
      %897 = vmatpush.msra.mxu0 0.0
      %898 = vmatpush.msra.mxu0 0.0
      %899 = vmatpush.msra.mxu0 0.0
      %900 = vmatpush.msra.mxu0 0.0
      %901 = vmatpush.msra.mxu0 %v834
      %902 = vmatmul.f32.gmra.mxu0 %v844
      %v903 = vpop.f32.mrf.mxu0
      %v904 = vadd.f32 %v841, %v903
      %905 = vdwg.mxu0
      %906 = vmatpush.msra.mxu0 0.0
      %907 = vmatpush.msra.mxu0 0.0
      %908 = vmatpush.msra.mxu0 0.0
      %909 = vmatpush.msra.mxu0 0.0
      %910 = vmatpush.msra.mxu0 0.0
      %911 = vmatpush.msra.mxu0 0.0
      %912 = vmatpush.msra.mxu0 0.0
      %913 = vmatpush.msra.mxu0 0.0
      %914 = vmatpush.msra.mxu0 0.0
      %915 = vmatpush.msra.mxu0 0.0
      %916 = vmatpush.msra.mxu0 0.0
      %917 = vmatpush.msra.mxu0 0.0
      %918 = vmatpush.msra.mxu0 0.0
      %919 = vmatpush.msra.mxu0 0.0
      %920 = vmatpush.msra.mxu0 0.0
      %921 = vmatpush.msra.mxu0 %v835
      %922 = vmatmul.f32.gmra.mxu0 %v844
      %v923 = vpop.f32.mrf.mxu0
      %v924 = vadd.f32 %v841, %v923
      %925 = vdwg.mxu0
      %v926 = vtanh.pop %v864
      %v927 = vtanh.pop %v884
      %v928 = vtanh.pop %v904
      %v929 = vtanh.pop %v924
      %v930 = vld [vmem:[%s7] sm:$0xff]
      %v931 = vld [vmem:[%s8] sm:$0xff]
      %933 = vset.pattern.permute.xlu0 0
      %934 = vperm.xlu0 %933, %v931
      %v935 = vpop.permute.xlu0 %934
      %v938 = vsel %vm748, %v930, 0
      %940 = vmatpush.msra.mxu0 0.0
      %941 = vmatpush.msra.mxu0 0.0
      %942 = vmatpush.msra.mxu0 0.0
      %943 = vmatpush.msra.mxu0 0.0
      %944 = vmatpush.msra.mxu0 0.0
      %945 = vmatpush.msra.mxu0 0.0
      %946 = vmatpush.msra.mxu0 0.0
      %947 = vmatpush.msra.mxu0 0.0
      %948 = vmatpush.msra.mxu0 0.0
      %949 = vmatpush.msra.mxu0 0.0
      %950 = vmatpush.msra.mxu0 0.0
      %951 = vmatpush.msra.mxu0 0.0
      %952 = vmatpush.msra.mxu0 0.0
      %953 = vmatpush.msra.mxu0 0.0
      %954 = vmatpush.msra.mxu0 0.0
      %955 = vmatpush.msra.mxu0 %v926
      %956 = vmatmul.f32.gmra.mxu0 %v938
      %v957 = vpop.f32.mrf.mxu0
      %v958 = vadd.f32 %v935, %v957
      %959 = vdwg.mxu0
      %960 = vmatpush.msra.mxu0 0.0
      %961 = vmatpush.msra.mxu0 0.0
      %962 = vmatpush.msra.mxu0 0.0
      %963 = vmatpush.msra.mxu0 0.0
      %964 = vmatpush.msra.mxu0 0.0
      %965 = vmatpush.msra.mxu0 0.0
      %966 = vmatpush.msra.mxu0 0.0
      %967 = vmatpush.msra.mxu0 0.0
      %968 = vmatpush.msra.mxu0 0.0
      %969 = vmatpush.msra.mxu0 0.0
      %970 = vmatpush.msra.mxu0 0.0
      %971 = vmatpush.msra.mxu0 0.0
      %972 = vmatpush.msra.mxu0 0.0
      %973 = vmatpush.msra.mxu0 0.0
      %974 = vmatpush.msra.mxu0 0.0
      %975 = vmatpush.msra.mxu0 %v927
      %976 = vmatmul.f32.gmra.mxu0 %v938
      %v977 = vpop.f32.mrf.mxu0
      %v978 = vadd.f32 %v935, %v977
      %979 = vdwg.mxu0
      %980 = vmatpush.msra.mxu0 0.0
      %981 = vmatpush.msra.mxu0 0.0
      %982 = vmatpush.msra.mxu0 0.0
      %983 = vmatpush.msra.mxu0 0.0
      %984 = vmatpush.msra.mxu0 0.0
      %985 = vmatpush.msra.mxu0 0.0
      %986 = vmatpush.msra.mxu0 0.0
      %987 = vmatpush.msra.mxu0 0.0
      %988 = vmatpush.msra.mxu0 0.0
      %989 = vmatpush.msra.mxu0 0.0
      %990 = vmatpush.msra.mxu0 0.0
      %991 = vmatpush.msra.mxu0 0.0
      %992 = vmatpush.msra.mxu0 0.0
      %993 = vmatpush.msra.mxu0 0.0
      %994 = vmatpush.msra.mxu0 0.0
      %995 = vmatpush.msra.mxu0 %v928
      %996 = vmatmul.f32.gmra.mxu0 %v938
      %v997 = vpop.f32.mrf.mxu0
      %v998 = vadd.f32 %v935, %v997
      %999 = vdwg.mxu0
      %1000 = vmatpush.msra.mxu0 0.0
      %1001 = vmatpush.msra.mxu0 0.0
      %1002 = vmatpush.msra.mxu0 0.0
      %1003 = vmatpush.msra.mxu0 0.0
      %1004 = vmatpush.msra.mxu0 0.0
      %1005 = vmatpush.msra.mxu0 0.0
      %1006 = vmatpush.msra.mxu0 0.0
      %1007 = vmatpush.msra.mxu0 0.0
      %1008 = vmatpush.msra.mxu0 0.0
      %1009 = vmatpush.msra.mxu0 0.0
      %1010 = vmatpush.msra.mxu0 0.0
      %1011 = vmatpush.msra.mxu0 0.0
      %1012 = vmatpush.msra.mxu0 0.0
      %1013 = vmatpush.msra.mxu0 0.0
      %1014 = vmatpush.msra.mxu0 0.0
      %1015 = vmatpush.msra.mxu0 %v929
      %1016 = vmatmul.f32.gmra.mxu0 %v938
      %v1017 = vpop.f32.mrf.mxu0
      %v1018 = vadd.f32 %v935, %v1017
      %1019 = vdwg.mxu0
      %v1020 = vtanh.pop %v958
      %v1021 = vtanh.pop %v978
      %v1022 = vtanh.pop %v998
      %v1023 = vtanh.pop %v1018
      %v1024 = vld [vmem:[%s9] sm:$0xff]
      %v1025 = vld [vmem:[%s10] sm:$0x1]
      %v1027 = vperm.slane %v1025, 0
      %1029 = vxpose.xlu0.b32.start [1/16] %v1020, 128
      %1030 = vxpose.xlu0.b32.cont [2/16] 0.0, 128
      %1031 = vxpose.xlu0.b32.cont [3/16] 0.0, 128
      %1032 = vxpose.xlu0.b32.cont [4/16] 0.0, 128
      %1033 = vxpose.xlu0.b32.cont [5/16] 0.0, 128
      %1034 = vxpose.xlu0.b32.cont [6/16] 0.0, 128
      %1035 = vxpose.xlu0.b32.cont [7/16] 0.0, 128
      %1036 = vxpose.xlu0.b32.cont [8/16] 0.0, 128
      %1037 = vxpose.xlu0.b32.cont [9/16] 0.0, 128
      %1038 = vxpose.xlu0.b32.cont [10/16] 0.0, 128
      %1039 = vxpose.xlu0.b32.cont [11/16] 0.0, 128
      %1040 = vxpose.xlu0.b32.cont [12/16] 0.0, 128
      %1041 = vxpose.xlu0.b32.cont [13/16] 0.0, 128
      %1042 = vxpose.xlu0.b32.cont [14/16] 0.0, 128
      %1043 = vxpose.xlu0.b32.cont [15/16] 0.0, 128
      %1044 = vxpose.xlu0.b32.end [16/16] 0.0, 128
      %v1045 = vpop.trf.xlu0
      %v1046 = vpop.trf.xlu0
      %v1047 = vpop.trf.xlu0
      %v1048 = vpop.trf.xlu0
      %v1049 = vpop.trf.xlu0
      %v1050 = vpop.trf.xlu0
      %v1051 = vpop.trf.xlu0
      %v1052 = vpop.trf.xlu0
      %v1053 = vpop.trf.xlu0
      %v1054 = vpop.trf.xlu0
      %v1055 = vpop.trf.xlu0
      %v1056 = vpop.trf.xlu0
      %v1057 = vpop.trf.xlu0
      %v1058 = vpop.trf.xlu0
      %v1059 = vpop.trf.xlu0
      %v1060 = vpop.trf.xlu0
      %1061 = vxpose.xlu0.b32.start [1/16] %v1021, 128
      %1062 = vxpose.xlu0.b32.cont [2/16] 0.0, 128
      %1063 = vxpose.xlu0.b32.cont [3/16] 0.0, 128
      %1064 = vxpose.xlu0.b32.cont [4/16] 0.0, 128
      %1065 = vxpose.xlu0.b32.cont [5/16] 0.0, 128
      %1066 = vxpose.xlu0.b32.cont [6/16] 0.0, 128
      %1067 = vxpose.xlu0.b32.cont [7/16] 0.0, 128
      %1068 = vxpose.xlu0.b32.cont [8/16] 0.0, 128
      %1069 = vxpose.xlu0.b32.cont [9/16] 0.0, 128
      %1070 = vxpose.xlu0.b32.cont [10/16] 0.0, 128
      %1071 = vxpose.xlu0.b32.cont [11/16] 0.0, 128
      %1072 = vxpose.xlu0.b32.cont [12/16] 0.0, 128
      %1073 = vxpose.xlu0.b32.cont [13/16] 0.0, 128
      %1074 = vxpose.xlu0.b32.cont [14/16] 0.0, 128
      %1075 = vxpose.xlu0.b32.cont [15/16] 0.0, 128
      %1076 = vxpose.xlu0.b32.end [16/16] 0.0, 128
      %v1077 = vpop.trf.xlu0
      %v1078 = vpop.trf.xlu0
      %v1079 = vpop.trf.xlu0
      %v1080 = vpop.trf.xlu0
      %v1081 = vpop.trf.xlu0
      %v1082 = vpop.trf.xlu0
      %v1083 = vpop.trf.xlu0
      %v1084 = vpop.trf.xlu0
      %v1085 = vpop.trf.xlu0
      %v1086 = vpop.trf.xlu0
      %v1087 = vpop.trf.xlu0
      %v1088 = vpop.trf.xlu0
      %v1089 = vpop.trf.xlu0
      %v1090 = vpop.trf.xlu0
      %v1091 = vpop.trf.xlu0
      %v1092 = vpop.trf.xlu0
      %1093 = vxpose.xlu0.b32.start [1/16] %v1022, 128
      %1094 = vxpose.xlu0.b32.cont [2/16] 0.0, 128
      %1095 = vxpose.xlu0.b32.cont [3/16] 0.0, 128
      %1096 = vxpose.xlu0.b32.cont [4/16] 0.0, 128
      %1097 = vxpose.xlu0.b32.cont [5/16] 0.0, 128
      %1098 = vxpose.xlu0.b32.cont [6/16] 0.0, 128
      %1099 = vxpose.xlu0.b32.cont [7/16] 0.0, 128
      %1100 = vxpose.xlu0.b32.cont [8/16] 0.0, 128
      %1101 = vxpose.xlu0.b32.cont [9/16] 0.0, 128
      %1102 = vxpose.xlu0.b32.cont [10/16] 0.0, 128
      %1103 = vxpose.xlu0.b32.cont [11/16] 0.0, 128
      %1104 = vxpose.xlu0.b32.cont [12/16] 0.0, 128
      %1105 = vxpose.xlu0.b32.cont [13/16] 0.0, 128
      %1106 = vxpose.xlu0.b32.cont [14/16] 0.0, 128
      %1107 = vxpose.xlu0.b32.cont [15/16] 0.0, 128
      %1108 = vxpose.xlu0.b32.end [16/16] 0.0, 128
      %v1109 = vpop.trf.xlu0
      %v1110 = vpop.trf.xlu0
      %v1111 = vpop.trf.xlu0
      %v1112 = vpop.trf.xlu0
      %v1113 = vpop.trf.xlu0
      %v1114 = vpop.trf.xlu0
      %v1115 = vpop.trf.xlu0
      %v1116 = vpop.trf.xlu0
      %v1117 = vpop.trf.xlu0
      %v1118 = vpop.trf.xlu0
      %v1119 = vpop.trf.xlu0
      %v1120 = vpop.trf.xlu0
      %v1121 = vpop.trf.xlu0
      %v1122 = vpop.trf.xlu0
      %v1123 = vpop.trf.xlu0
      %v1124 = vpop.trf.xlu0
      %1125 = vxpose.xlu0.b32.start [1/16] %v1023, 128
      %1126 = vxpose.xlu0.b32.cont [2/16] 0.0, 128
      %1127 = vxpose.xlu0.b32.cont [3/16] 0.0, 128
      %1128 = vxpose.xlu0.b32.cont [4/16] 0.0, 128
      %1129 = vxpose.xlu0.b32.cont [5/16] 0.0, 128
      %1130 = vxpose.xlu0.b32.cont [6/16] 0.0, 128
      %1131 = vxpose.xlu0.b32.cont [7/16] 0.0, 128
      %1132 = vxpose.xlu0.b32.cont [8/16] 0.0, 128
      %1133 = vxpose.xlu0.b32.cont [9/16] 0.0, 128
      %1134 = vxpose.xlu0.b32.cont [10/16] 0.0, 128
      %1135 = vxpose.xlu0.b32.cont [11/16] 0.0, 128
      %1136 = vxpose.xlu0.b32.cont [12/16] 0.0, 128
      %1137 = vxpose.xlu0.b32.cont [13/16] 0.0, 128
      %1138 = vxpose.xlu0.b32.cont [14/16] 0.0, 128
      %1139 = vxpose.xlu0.b32.cont [15/16] 0.0, 128
      %1140 = vxpose.xlu0.b32.end [16/16] 0.0, 128
      %v1141 = vpop.trf.xlu0
      %v1142 = vpop.trf.xlu0
      %v1143 = vpop.trf.xlu0
      %v1144 = vpop.trf.xlu0
      %v1145 = vpop.trf.xlu0
      %v1146 = vpop.trf.xlu0
      %v1147 = vpop.trf.xlu0
      %v1148 = vpop.trf.xlu0
      %v1149 = vpop.trf.xlu0
      %v1150 = vpop.trf.xlu0
      %v1151 = vpop.trf.xlu0
      %v1152 = vpop.trf.xlu0
      %v1153 = vpop.trf.xlu0
      %v1154 = vpop.trf.xlu0
      %v1155 = vpop.trf.xlu0
      %v1156 = vpop.trf.xlu0
      %v1158 = vsel %vm748, %v1045, 0
      %v1161 = vsel %vm748, %v1046, 0
      %v1164 = vsel %vm748, %v1047, 0
      %v1167 = vsel %vm748, %v1048, 0
      %v1170 = vsel %vm748, %v1049, 0
      %v1173 = vsel %vm748, %v1050, 0
      %v1176 = vsel %vm748, %v1051, 0
      %v1179 = vsel %vm748, %v1052, 0
      %v1182 = vsel %vm748, %v1053, 0
      %v1185 = vsel %vm748, %v1054, 0
      %v1188 = vsel %vm748, %v1055, 0
      %v1191 = vsel %vm748, %v1056, 0
      %v1194 = vsel %vm748, %v1057, 0
      %v1197 = vsel %vm748, %v1058, 0
      %v1200 = vsel %vm748, %v1059, 0
      %v1203 = vsel %vm748, %v1060, 0
      %v1206 = vsel %vm748, %v1077, 0
      %v1209 = vsel %vm748, %v1078, 0
      %v1212 = vsel %vm748, %v1079, 0
      %v1215 = vsel %vm748, %v1080, 0
      %v1218 = vsel %vm748, %v1081, 0
      %v1221 = vsel %vm748, %v1082, 0
      %v1224 = vsel %vm748, %v1083, 0
      %v1227 = vsel %vm748, %v1084, 0
      %v1230 = vsel %vm748, %v1085, 0
      %v1233 = vsel %vm748, %v1086, 0
      %v1236 = vsel %vm748, %v1087, 0
      %v1239 = vsel %vm748, %v1088, 0
      %v1242 = vsel %vm748, %v1089, 0
      %v1245 = vsel %vm748, %v1090, 0
      %v1248 = vsel %vm748, %v1091, 0
      %v1251 = vsel %vm748, %v1092, 0
      %v1254 = vsel %vm748, %v1109, 0
      %v1257 = vsel %vm748, %v1110, 0
      %v1260 = vsel %vm748, %v1111, 0
      %v1263 = vsel %vm748, %v1112, 0
      %v1266 = vsel %vm748, %v1113, 0
      %v1269 = vsel %vm748, %v1114, 0
      %v1272 = vsel %vm748, %v1115, 0
      %v1275 = vsel %vm748, %v1116, 0
      %v1278 = vsel %vm748, %v1117, 0
      %v1281 = vsel %vm748, %v1118, 0
      %v1284 = vsel %vm748, %v1119, 0
      %v1287 = vsel %vm748, %v1120, 0
      %v1290 = vsel %vm748, %v1121, 0
      %v1293 = vsel %vm748, %v1122, 0
      %v1296 = vsel %vm748, %v1123, 0
      %v1299 = vsel %vm748, %v1124, 0
      %v1302 = vsel %vm748, %v1141, 0
      %v1305 = vsel %vm748, %v1142, 0
      %v1308 = vsel %vm748, %v1143, 0
      %v1311 = vsel %vm748, %v1144, 0
      %v1314 = vsel %vm748, %v1145, 0
      %v1317 = vsel %vm748, %v1146, 0
      %v1320 = vsel %vm748, %v1147, 0
      %v1323 = vsel %vm748, %v1148, 0
      %v1326 = vsel %vm748, %v1149, 0
      %v1329 = vsel %vm748, %v1150, 0
      %v1332 = vsel %vm748, %v1151, 0
      %v1335 = vsel %vm748, %v1152, 0
      %v1338 = vsel %vm748, %v1153, 0
      %v1341 = vsel %vm748, %v1154, 0
      %v1344 = vsel %vm748, %v1155, 0
      %v1347 = vsel %vm748, %v1156, 0
      %1349 = vmatpush.msra.mxu0 0.0
      %1350 = vmatpush.msra.mxu0 0.0
      %1351 = vmatpush.msra.mxu0 0.0
      %1352 = vmatpush.msra.mxu0 0.0
      %1353 = vmatpush.msra.mxu0 0.0
      %1354 = vmatpush.msra.mxu0 0.0
      %1355 = vmatpush.msra.mxu0 0.0
      %1356 = vmatpush.msra.mxu0 0.0
      %1357 = vmatpush.msra.mxu0 0.0
      %1358 = vmatpush.msra.mxu0 0.0
      %1359 = vmatpush.msra.mxu0 0.0
      %1360 = vmatpush.msra.mxu0 0.0
      %1361 = vmatpush.msra.mxu0 0.0
      %1362 = vmatpush.msra.mxu0 0.0
      %1363 = vmatpush.msra.mxu0 0.0
      %1364 = vmatpush.msra.mxu0 %v1024
      %1365 = vmatmul.f32.gmra.mxu0 %v1158
      %v1366 = vpop.f32.mrf.mxu0
      %v1367 = vadd.f32 %v1027, %v1366
      %1368 = vmatmul.f32.gmra.mxu0 %v1161
      %v1369 = vpop.f32.mrf.mxu0
      %v1370 = vadd.f32 %v1027, %v1369
      %1371 = vmatmul.f32.gmra.mxu0 %v1164
      %v1372 = vpop.f32.mrf.mxu0
      %v1373 = vadd.f32 %v1027, %v1372
      %1374 = vmatmul.f32.gmra.mxu0 %v1167
      %v1375 = vpop.f32.mrf.mxu0
      %v1376 = vadd.f32 %v1027, %v1375
      %1377 = vmatmul.f32.gmra.mxu0 %v1170
      %v1378 = vpop.f32.mrf.mxu0
      %v1379 = vadd.f32 %v1027, %v1378
      %1380 = vmatmul.f32.gmra.mxu0 %v1173
      %v1381 = vpop.f32.mrf.mxu0
      %v1382 = vadd.f32 %v1027, %v1381
      %1383 = vmatmul.f32.gmra.mxu0 %v1176
      %v1384 = vpop.f32.mrf.mxu0
      %v1385 = vadd.f32 %v1027, %v1384
      %1386 = vmatmul.f32.gmra.mxu0 %v1179
      %v1387 = vpop.f32.mrf.mxu0
      %v1388 = vadd.f32 %v1027, %v1387
      %1389 = vmatmul.f32.gmra.mxu0 %v1182
      %v1390 = vpop.f32.mrf.mxu0
      %v1391 = vadd.f32 %v1027, %v1390
      %1392 = vmatmul.f32.gmra.mxu0 %v1185
      %v1393 = vpop.f32.mrf.mxu0
      %v1394 = vadd.f32 %v1027, %v1393
      %1395 = vmatmul.f32.gmra.mxu0 %v1188
      %v1396 = vpop.f32.mrf.mxu0
      %v1397 = vadd.f32 %v1027, %v1396
      %1398 = vmatmul.f32.gmra.mxu0 %v1191
      %v1399 = vpop.f32.mrf.mxu0
      %v1400 = vadd.f32 %v1027, %v1399
      %1401 = vmatmul.f32.gmra.mxu0 %v1194
      %v1402 = vpop.f32.mrf.mxu0
      %v1403 = vadd.f32 %v1027, %v1402
      %1404 = vmatmul.f32.gmra.mxu0 %v1197
      %v1405 = vpop.f32.mrf.mxu0
      %v1406 = vadd.f32 %v1027, %v1405
      %1407 = vmatmul.f32.gmra.mxu0 %v1200
      %v1408 = vpop.f32.mrf.mxu0
      %v1409 = vadd.f32 %v1027, %v1408
      %1410 = vmatmul.f32.gmra.mxu0 %v1203
      %v1411 = vpop.f32.mrf.mxu0
      %v1412 = vadd.f32 %v1027, %v1411
      %1413 = vmatmul.f32.gmra.mxu0 %v1206
      %v1414 = vpop.f32.mrf.mxu0
      %v1415 = vadd.f32 %v1027, %v1414
      %1416 = vmatmul.f32.gmra.mxu0 %v1209
      %v1417 = vpop.f32.mrf.mxu0
      %v1418 = vadd.f32 %v1027, %v1417
      %1419 = vmatmul.f32.gmra.mxu0 %v1212
      %v1420 = vpop.f32.mrf.mxu0
      %v1421 = vadd.f32 %v1027, %v1420
      %1422 = vmatmul.f32.gmra.mxu0 %v1215
      %v1423 = vpop.f32.mrf.mxu0
      %v1424 = vadd.f32 %v1027, %v1423
      %1425 = vmatmul.f32.gmra.mxu0 %v1218
      %v1426 = vpop.f32.mrf.mxu0
      %v1427 = vadd.f32 %v1027, %v1426
      %1428 = vmatmul.f32.gmra.mxu0 %v1221
      %v1429 = vpop.f32.mrf.mxu0
      %v1430 = vadd.f32 %v1027, %v1429
      %1431 = vmatmul.f32.gmra.mxu0 %v1224
      %v1432 = vpop.f32.mrf.mxu0
      %v1433 = vadd.f32 %v1027, %v1432
      %1434 = vmatmul.f32.gmra.mxu0 %v1227
      %v1435 = vpop.f32.mrf.mxu0
      %v1436 = vadd.f32 %v1027, %v1435
      %1437 = vmatmul.f32.gmra.mxu0 %v1230
      %v1438 = vpop.f32.mrf.mxu0
      %v1439 = vadd.f32 %v1027, %v1438
      %1440 = vmatmul.f32.gmra.mxu0 %v1233
      %v1441 = vpop.f32.mrf.mxu0
      %v1442 = vadd.f32 %v1027, %v1441
      %1443 = vmatmul.f32.gmra.mxu0 %v1236
      %v1444 = vpop.f32.mrf.mxu0
      %v1445 = vadd.f32 %v1027, %v1444
      %1446 = vmatmul.f32.gmra.mxu0 %v1239
      %v1447 = vpop.f32.mrf.mxu0
      %v1448 = vadd.f32 %v1027, %v1447
      %1449 = vmatmul.f32.gmra.mxu0 %v1242
      %v1450 = vpop.f32.mrf.mxu0
      %v1451 = vadd.f32 %v1027, %v1450
      %1452 = vmatmul.f32.gmra.mxu0 %v1245
      %v1453 = vpop.f32.mrf.mxu0
      %v1454 = vadd.f32 %v1027, %v1453
      %1455 = vmatmul.f32.gmra.mxu0 %v1248
      %v1456 = vpop.f32.mrf.mxu0
      %v1457 = vadd.f32 %v1027, %v1456
      %1458 = vmatmul.f32.gmra.mxu0 %v1251
      %v1459 = vpop.f32.mrf.mxu0
      %v1460 = vadd.f32 %v1027, %v1459
      %1461 = vmatmul.f32.gmra.mxu0 %v1254
      %v1462 = vpop.f32.mrf.mxu0
      %v1463 = vadd.f32 %v1027, %v1462
      %1464 = vmatmul.f32.gmra.mxu0 %v1257
      %v1465 = vpop.f32.mrf.mxu0
      %v1466 = vadd.f32 %v1027, %v1465
      %1467 = vmatmul.f32.gmra.mxu0 %v1260
      %v1468 = vpop.f32.mrf.mxu0
      %v1469 = vadd.f32 %v1027, %v1468
      %1470 = vmatmul.f32.gmra.mxu0 %v1263
      %v1471 = vpop.f32.mrf.mxu0
      %v1472 = vadd.f32 %v1027, %v1471
      %1473 = vmatmul.f32.gmra.mxu0 %v1266
      %v1474 = vpop.f32.mrf.mxu0
      %v1475 = vadd.f32 %v1027, %v1474
      %1476 = vmatmul.f32.gmra.mxu0 %v1269
      %v1477 = vpop.f32.mrf.mxu0
      %v1478 = vadd.f32 %v1027, %v1477
      %1479 = vmatmul.f32.gmra.mxu0 %v1272
      %v1480 = vpop.f32.mrf.mxu0
      %v1481 = vadd.f32 %v1027, %v1480
      %1482 = vmatmul.f32.gmra.mxu0 %v1275
      %v1483 = vpop.f32.mrf.mxu0
      %v1484 = vadd.f32 %v1027, %v1483
      %1485 = vmatmul.f32.gmra.mxu0 %v1278
      %v1486 = vpop.f32.mrf.mxu0
      %v1487 = vadd.f32 %v1027, %v1486
      %1488 = vmatmul.f32.gmra.mxu0 %v1281
      %v1489 = vpop.f32.mrf.mxu0
      %v1490 = vadd.f32 %v1027, %v1489
      %1491 = vmatmul.f32.gmra.mxu0 %v1284
      %v1492 = vpop.f32.mrf.mxu0
      %v1493 = vadd.f32 %v1027, %v1492
      %1494 = vmatmul.f32.gmra.mxu0 %v1287
      %v1495 = vpop.f32.mrf.mxu0
      %v1496 = vadd.f32 %v1027, %v1495
      %1497 = vmatmul.f32.gmra.mxu0 %v1290
      %v1498 = vpop.f32.mrf.mxu0
      %v1499 = vadd.f32 %v1027, %v1498
      %1500 = vmatmul.f32.gmra.mxu0 %v1293
      %v1501 = vpop.f32.mrf.mxu0
      %v1502 = vadd.f32 %v1027, %v1501
      %1503 = vmatmul.f32.gmra.mxu0 %v1296
      %v1504 = vpop.f32.mrf.mxu0
      %v1505 = vadd.f32 %v1027, %v1504
      %1506 = vmatmul.f32.gmra.mxu0 %v1299
      %v1507 = vpop.f32.mrf.mxu0
      %v1508 = vadd.f32 %v1027, %v1507
      %1509 = vmatmul.f32.gmra.mxu0 %v1302
      %v1510 = vpop.f32.mrf.mxu0
      %v1511 = vadd.f32 %v1027, %v1510
      %1512 = vmatmul.f32.gmra.mxu0 %v1305
      %v1513 = vpop.f32.mrf.mxu0
      %v1514 = vadd.f32 %v1027, %v1513
      %1515 = vmatmul.f32.gmra.mxu0 %v1308
      %v1516 = vpop.f32.mrf.mxu0
      %v1517 = vadd.f32 %v1027, %v1516
      %1518 = vmatmul.f32.gmra.mxu0 %v1311
      %v1519 = vpop.f32.mrf.mxu0
      %v1520 = vadd.f32 %v1027, %v1519
      %1521 = vmatmul.f32.gmra.mxu0 %v1314
      %v1522 = vpop.f32.mrf.mxu0
      %v1523 = vadd.f32 %v1027, %v1522
      %1524 = vmatmul.f32.gmra.mxu0 %v1317
      %v1525 = vpop.f32.mrf.mxu0
      %v1526 = vadd.f32 %v1027, %v1525
      %1527 = vmatmul.f32.gmra.mxu0 %v1320
      %v1528 = vpop.f32.mrf.mxu0
      %v1529 = vadd.f32 %v1027, %v1528
      %1530 = vmatmul.f32.gmra.mxu0 %v1323
      %v1531 = vpop.f32.mrf.mxu0
      %v1532 = vadd.f32 %v1027, %v1531
      %1533 = vmatmul.f32.gmra.mxu0 %v1326
      %v1534 = vpop.f32.mrf.mxu0
      %v1535 = vadd.f32 %v1027, %v1534
      %1536 = vmatmul.f32.gmra.mxu0 %v1329
      %v1537 = vpop.f32.mrf.mxu0
      %v1538 = vadd.f32 %v1027, %v1537
      %1539 = vmatmul.f32.gmra.mxu0 %v1332
      %v1540 = vpop.f32.mrf.mxu0
      %v1541 = vadd.f32 %v1027, %v1540
      %1542 = vmatmul.f32.gmra.mxu0 %v1335
      %v1543 = vpop.f32.mrf.mxu0
      %v1544 = vadd.f32 %v1027, %v1543
      %1545 = vmatmul.f32.gmra.mxu0 %v1338
      %v1546 = vpop.f32.mrf.mxu0
      %v1547 = vadd.f32 %v1027, %v1546
      %1548 = vmatmul.f32.gmra.mxu0 %v1341
      %v1549 = vpop.f32.mrf.mxu0
      %v1550 = vadd.f32 %v1027, %v1549
      %1551 = vmatmul.f32.gmra.mxu0 %v1344
      %v1552 = vpop.f32.mrf.mxu0
      %v1553 = vadd.f32 %v1027, %v1552
      %1554 = vmatmul.f32.gmra.mxu0 %v1347
      %v1555 = vpop.f32.mrf.mxu0
      %v1556 = vadd.f32 %v1027, %v1555
      %1557 = vdwg.mxu0
      %1558 = vst.msk [vmem:[%s388] sm:$0xff] %vm461, %v1367
      %1559 = vst.msk [vmem:[%s388 + $0x8] sm:$0xff] %vm461, %v1370
      %1560 = vst.msk [vmem:[%s388 + $0x10] sm:$0xff] %vm461, %v1373
      %1561 = vst.msk [vmem:[%s388 + $0x18] sm:$0xff] %vm461, %v1376
      %1562 = vst.msk [vmem:[%s388 + $0x20] sm:$0xff] %vm461, %v1379
      %1563 = vst.msk [vmem:[%s388 + $0x28] sm:$0xff] %vm461, %v1382
      %1564 = vst.msk [vmem:[%s388 + $0x30] sm:$0xff] %vm461, %v1385
      %1565 = vst.msk [vmem:[%s388 + $0x38] sm:$0xff] %vm461, %v1388
      %1566 = vst.msk [vmem:[%s388 + $0x40] sm:$0xff] %vm461, %v1391
      %1567 = vst.msk [vmem:[%s388 + $0x48] sm:$0xff] %vm461, %v1394
      %1568 = vst.msk [vmem:[%s388 + $0x50] sm:$0xff] %vm461, %v1397
      %1569 = vst.msk [vmem:[%s388 + $0x58] sm:$0xff] %vm461, %v1400
      %1570 = vst.msk [vmem:[%s388 + $0x60] sm:$0xff] %vm461, %v1403
      %1571 = vst.msk [vmem:[%s388 + $0x68] sm:$0xff] %vm461, %v1406
      %1572 = vst.msk [vmem:[%s388 + $0x70] sm:$0xff] %vm461, %v1409
      %1573 = vst.msk [vmem:[%s388 + $0x78] sm:$0xff] %vm461, %v1412
      %1574 = vst.msk [vmem:[%s388 + $0x80] sm:$0xff] %vm461, %v1415
      %1575 = vst.msk [vmem:[%s388 + $0x88] sm:$0xff] %vm461, %v1418
      %1576 = vst.msk [vmem:[%s388 + $0x90] sm:$0xff] %vm461, %v1421
      %1577 = vst.msk [vmem:[%s388 + $0x98] sm:$0xff] %vm461, %v1424
      %1578 = vst.msk [vmem:[%s388 + $0xa0] sm:$0xff] %vm461, %v1427
      %1579 = vst.msk [vmem:[%s388 + $0xa8] sm:$0xff] %vm461, %v1430
      %1580 = vst.msk [vmem:[%s388 + $0xb0] sm:$0xff] %vm461, %v1433
      %1581 = vst.msk [vmem:[%s388 + $0xb8] sm:$0xff] %vm461, %v1436
      %1582 = vst.msk [vmem:[%s388 + $0xc0] sm:$0xff] %vm461, %v1439
      %1583 = vst.msk [vmem:[%s388 + $0xc8] sm:$0xff] %vm461, %v1442
      %1584 = vst.msk [vmem:[%s388 + $0xd0] sm:$0xff] %vm461, %v1445
      %1585 = vst.msk [vmem:[%s388 + $0xd8] sm:$0xff] %vm461, %v1448
      %1586 = vst.msk [vmem:[%s388 + $0xe0] sm:$0xff] %vm461, %v1451
      %1587 = vst.msk [vmem:[%s388 + $0xe8] sm:$0xff] %vm461, %v1454
      %1588 = vst.msk [vmem:[%s388 + $0xf0] sm:$0xff] %vm461, %v1457
      %1589 = vst.msk [vmem:[%s388 + $0xf8] sm:$0xff] %vm461, %v1460
      %1590 = vst.msk [vmem:[%s388 + $0x100] sm:$0xff] %vm461, %v1463
      %1591 = vst.msk [vmem:[%s388 + $0x108] sm:$0xff] %vm461, %v1466
      %1592 = vst.msk [vmem:[%s388 + $0x110] sm:$0xff] %vm461, %v1469
      %1593 = vst.msk [vmem:[%s388 + $0x118] sm:$0xff] %vm461, %v1472
      %1594 = vst.msk [vmem:[%s388 + $0x120] sm:$0xff] %vm461, %v1475
      %1595 = vst.msk [vmem:[%s388 + $0x128] sm:$0xff] %vm461, %v1478
      %1596 = vst.msk [vmem:[%s388 + $0x130] sm:$0xff] %vm461, %v1481
      %1597 = vst.msk [vmem:[%s388 + $0x138] sm:$0xff] %vm461, %v1484
      %1598 = vst.msk [vmem:[%s388 + $0x140] sm:$0xff] %vm461, %v1487
      %1599 = vst.msk [vmem:[%s388 + $0x148] sm:$0xff] %vm461, %v1490
      %1600 = vst.msk [vmem:[%s388 + $0x150] sm:$0xff] %vm461, %v1493
      %1601 = vst.msk [vmem:[%s388 + $0x158] sm:$0xff] %vm461, %v1496
      %1602 = vst.msk [vmem:[%s388 + $0x160] sm:$0xff] %vm461, %v1499
      %1603 = vst.msk [vmem:[%s388 + $0x168] sm:$0xff] %vm461, %v1502
      %1604 = vst.msk [vmem:[%s388 + $0x170] sm:$0xff] %vm461, %v1505
      %1605 = vst.msk [vmem:[%s388 + $0x178] sm:$0xff] %vm461, %v1508
      %1606 = vst.msk [vmem:[%s388 + $0x180] sm:$0xff] %vm461, %v1511
      %1607 = vst.msk [vmem:[%s388 + $0x188] sm:$0xff] %vm461, %v1514
      %1608 = vst.msk [vmem:[%s388 + $0x190] sm:$0xff] %vm461, %v1517
      %1609 = vst.msk [vmem:[%s388 + $0x198] sm:$0xff] %vm461, %v1520
      %1610 = vst.msk [vmem:[%s388 + $0x1a0] sm:$0xff] %vm461, %v1523
      %1611 = vst.msk [vmem:[%s388 + $0x1a8] sm:$0xff] %vm461, %v1526
      %1612 = vst.msk [vmem:[%s388 + $0x1b0] sm:$0xff] %vm461, %v1529
      %1613 = vst.msk [vmem:[%s388 + $0x1b8] sm:$0xff] %vm461, %v1532
      %1614 = vst.msk [vmem:[%s388 + $0x1c0] sm:$0xff] %vm461, %v1535
      %1615 = vst.msk [vmem:[%s388 + $0x1c8] sm:$0xff] %vm461, %v1538
      %1616 = vst.msk [vmem:[%s388 + $0x1d0] sm:$0xff] %vm461, %v1541
      %1617 = vst.msk [vmem:[%s388 + $0x1d8] sm:$0xff] %vm461, %v1544
      %1618 = vst.msk [vmem:[%s388 + $0x1e0] sm:$0xff] %vm461, %v1547
      %1619 = vst.msk [vmem:[%s388 + $0x1e8] sm:$0xff] %vm461, %v1550
      %1620 = vst.msk [vmem:[%s388 + $0x1f0] sm:$0xff] %vm461, %v1553
      %1621 = vst.msk [vmem:[%s388 + $0x1f8] sm:$0xff] %vm461, %v1556
      %s1622 = smul.u32 64, %s22
      %p1623 = scmp.lt.s32.totalorder %s1622, 255
      %s1624 = scalar_select %p1623, %s1622, 255
      %s1625 = smul.addr %s1624, 8
      %s1626 = scalar_lea.vmem %s11, %s1625
      // Predicated region
      $region65: #{tpu_custom_call.1} parent=63 // pred_check
        %p1627 = pneg %p276
      $region66: #{tpu_custom_call.1} parent=63 // pred_check_branch
        %1629 = sbr.rel (%p1627) target = $region68
      $region67: #{tpu_custom_call.1} parent=63 // pred_region
        %s1630 = smul.u32 64, %s22
      $region68: #{tpu_custom_call.1} parent=63 // pred_fallthru
        _
    $region64: #{tpu_custom_call.1} parent=5 // pred_fallthru
      _
    %p1631 = scmp.le.s32.totalorder 2, %s17
    // Predicated region
    $region69: #{tpu_custom_call.1} parent=5 // pred_check
      %p1632 = pneg %p1631
    $region70: #{tpu_custom_call.1} parent=5 // pred_check_branch
      %1634 = sbr.rel (%p1632) target = $region72
    $region71: #{tpu_custom_call.1} parent=5 // pred_region
      %s1635 = ssub.s32 %s17, 2
      // Predicated region
      $region73: #{tpu_custom_call.1} parent=71 // pred_check
        %p1636 = pneg %p282
      $region74: #{tpu_custom_call.1} parent=71 // pred_check_branch
        %1638 = sbr.rel (%p1636) target = $region76
      $region75: #{tpu_custom_call.1} parent=71 // pred_region
        %s1639 = smul.u32 64, %s23
        %p1640 = scmp.lt.s32.totalorder %s1639, 255
        %s1641 = scalar_select %p1640, %s1639, 255
        %s1642 = smul.addr %s1641, 8
        %s1643 = scalar_lea.vmem %s11, %s1642
      $region76: #{tpu_custom_call.1} parent=71 // pred_fallthru
        _
    $region72: #{tpu_custom_call.1} parent=5 // pred_fallthru
      _
  $region6: #{tpu_custom_call.1} parent=0 // loop_footer
    %s21 = sadd.s32 1, %s17
  $region7: #{tpu_custom_call.1} parent=0 // loop_footer_branch
    %16 = sbr.rel target = $region3
  $region8: #{tpu_custom_call.1} parent=0 // loop_exit
    _

</llo_original>
